<compile_context>
chip_gen: v6e
topology: v6e:2x2x1
jax: 0.10.0
libtpu: 0.0.40
codegen_flags: <defaults>
</compile_context>

<pallas_src>
import jax
import jax.numpy as jnp
from jax.experimental import pallas as pl
from jax.experimental.pallas import tpu as pltpu

# ---------------- config (small shapes consistent with the module) ----------------
B = 2              # batch
N_PART = 128       # points in partial input cloud
NPOINTS = 128      # self.npoints (default 2048, scaled down)
H1, H2 = 64, 128   # encoder hidden widths
CODE = 128         # latent code width
H = 128            # noise-prediction net hidden width
TDIM = 32          # timestep-embedding width
NUM_TIMESTEPS = 100
TM = 128           # row-block size over the point dim (use 512-1024 at real NPOINTS=2048)


# ---------------- fused Pallas kernel ----------------

def _fused_kernel(sab_ref, s1m_ref, part_ref, temb_ref,
                  we1_ref, eb1_ref, we2_ref, we3_ref,
                  w1x_ref, w1c_ref, w1t_ref, w2_ref, w3_ref, nb3_ref,
                  b128_ref, x0_ref, eps_ref,
                  loss_ref, cond_ref):
    """Encoder (step 0 only) + q_sample + eps-MLP + squared-error accumulation."""
    f32, bf16 = jnp.float32, jnp.bfloat16
    b = pl.program_id(0)
    j = pl.program_id(1)
    bsz = cond_ref.shape[0]

    @pl.when(jnp.logical_and(b == 0, j == 0))
    def _():
        # ---- encoder: shared per-point MLP + per-batch max pool (runs once) ----
        xp = part_ref[...]                                               # (B*Np, 3) f32
        h = jnp.dot(xp.astype(bf16), we1_ref[...], preferred_element_type=f32) + eb1_ref[...]
        h = jnp.maximum(h, 0.0)
        h = jnp.dot(h.astype(bf16), we2_ref[...], preferred_element_type=f32) + b128_ref[0:1, :]
        h = jnp.maximum(h, 0.0)
        h = jnp.dot(h.astype(bf16), we3_ref[...], preferred_element_type=f32) + b128_ref[1:2, :]
        npart = xp.shape[0] // bsz
        code = jnp.max(h.reshape(bsz, npart, h.shape[-1]), axis=1)       # (B, CODE)
        # conditioning rows: latent code + timestep embedding -> hidden
        cond_ref[...] = (
            jnp.dot(code.astype(bf16), w1c_ref[...], preferred_element_type=f32)
            + jnp.dot(temb_ref[...].astype(bf16), w1t_ref[...], preferred_element_type=f32))
        loss_ref[...] = jnp.zeros_like(loss_ref)

    # ---- q_sample for this (batch, row-block): xt = sqrt(ab_t)*x0 + sqrt(1-ab_t)*eps ----
    x0 = x0_ref[...]                                                     # (TM, 3) f32
    eps = eps_ref[...]
    xt = sab_ref[b] * x0 + s1m_ref[b] * eps                              # f32 (VPU)

    # ---- eps-prediction MLP (bf16 MXU operands, f32 accumulation) ----
    cond_row = cond_ref[pl.ds(b, 1), :]                                  # (1, H), broadcasts
    g = (jnp.dot(xt.astype(bf16), w1x_ref[...], preferred_element_type=f32)
         + cond_row + b128_ref[2:3, :])
    g = jnp.maximum(g, 0.0)
    g = jnp.dot(g.astype(bf16), w2_ref[...], preferred_element_type=f32) + b128_ref[3:4, :]
    g = jnp.maximum(g, 0.0)
    eps_pred = (jnp.dot(g.astype(bf16), w3_ref[...], preferred_element_type=f32)
                + nb3_ref[...])                                          # (TM, 3)

    diff = eps_pred - eps
    loss_ref[...] = loss_ref[...] + jnp.sum(diff * diff)


# ---------------- wrappers ----------------

def _resident(arr):
    """Full-array block with a constant index_map -> loaded once, resident across the grid."""
    shape = tuple(int(d) for d in arr.shape)
    zeros = (0,) * len(shape)
    return pl.BlockSpec(shape, lambda *_: zeros)


def fused_training_loss(partial, fine_gt, noise, temb, sqrt_ab, sqrt_1mab, params, tm=TM):
    """Returns scalar MSE(eps_pred, eps) averaged over B * NPOINTS * 3."""
    bsz, npart, cdim = partial.shape
    _, npts, _ = fine_gt.shape
    assert npts % tm == 0, "row-block size must divide NPOINTS"
    nb = npts // tm
    e, nn = params["encoder"], params["noise_net"]
    bf = lambda w: w.astype(jnp.bfloat16)

    partial_flat = partial.reshape(bsz * npart, cdim)
    # four 128-wide biases packed into one lane-dense array (fewer tiny DMA descriptors)
    bias128 = jnp.concatenate([e["b2"], e["b3"], nn["b1"], nn["b2"]], axis=0)   # (4, 128)

    args = (sqrt_ab, sqrt_1mab, partial_flat, temb,
            bf(e["w1"]), e["b1"], bf(e["w2"]), bf(e["w3"]),
            bf(nn["w1x"]), bf(nn["w1c"]), bf(nn["w1t"]), bf(nn["w2"]), bf(nn["w3"]), nn["b3"],
            bias128, fine_gt, noise)

    smem = pl.BlockSpec(memory_space=pltpu.MemorySpace.SMEM)
    row_spec = pl.BlockSpec((None, tm, cdim), lambda b, j: (b, j, 0))
    in_specs = ([smem, smem]
                + [_resident(a) for a in args[2:15]]
                + [row_spec, row_spec])

    # advisory cost estimate (flops = 2*M*K*N per matmul; bytes = actual HBM traffic)
    flops = int(2 * bsz * npart * (cdim * H1 + H1 * H2 + H2 * CODE)
                + 2 * bsz * (CODE * H + TDIM * H)
                + 2 * bsz * npts * (cdim * H + H * H + H * cdim))
    bytes_accessed = int(sum(a.size * a.dtype.itemsize for a in args) + 4)

    loss_sum = pl.pallas_call(
        _fused_kernel,
        out_shape=jax.ShapeDtypeStruct((1, 1), jnp.float32),
        grid=(bsz, nb),
        in_specs=in_specs,
        out_specs=pl.BlockSpec((1, 1), lambda b, j: (0, 0)),
        scratch_shapes=[pltpu.VMEM((bsz, H), jnp.float32)],
        compiler_params=pltpu.CompilerParams(
            dimension_semantics=("arbitrary", "arbitrary")),
        cost_estimate=pl.CostEstimate(flops=flops, transcendentals=0,
                                      bytes_accessed=bytes_accessed),
    )(*args)
    return loss_sum[0, 0] / (bsz * npts * cdim)


def timestep_embedding(t, dim):
    half = dim // 2
    freqs = jnp.exp(-jnp.log(10000.0) * jnp.arange(half, dtype=jnp.float32) / half)
    args = t.astype(jnp.float32)[:, None] * freqs[None, :]
    return jnp.concatenate([jnp.cos(args), jnp.sin(args)], axis=-1)        # (B, dim)


def diffu_completion_forward(pcds, params, key):
    """Training-mode forward of DiffuCompletion: returns the reconstruction loss."""
    fine_gt = pcds["pointcloud"]                                           # (B, NPOINTS, 3)
    partial = pcds["partial"]                                              # (B, N_PART, 3)
    bsz = partial.shape[0]
    k_t, k_noise = jax.random.split(key)
    t = jax.random.randint(k_t, (bsz,), 0, NUM_TIMESTEPS)                  # uniform sampler
    noise = jax.random.normal(k_noise, fine_gt.shape, jnp.float32)
    acp = params["alphas_cumprod"][t]
    sqrt_ab = jnp.sqrt(acp)                                                # (B,)
    sqrt_1mab = jnp.sqrt(1.0 - acp)                                        # (B,)
    temb = timestep_embedding(t, TDIM)                                     # (B, TDIM)
    # PyTorch feeds fine_gt.transpose(2, 1) == [B, 3, N] into Conv1d; the per-point 1x1
    # convs are plain matmuls, so we keep the TPU-natural channels-last layout.
    return fused_training_loss(partial, fine_gt, noise, temb, sqrt_ab, sqrt_1mab, params)


# ---------------- deterministic parameter init ----------------

def init_params(key):
    ks = jax.random.split(key, 8)

    def w(k, shape):
        return (jax.random.normal(k, shape, jnp.float32) / jnp.sqrt(shape[0])).astype(jnp.float32)

    enc = dict(
        w1=w(ks[0], (3, H1)),    b1=jnp.full((1, H1), 0.01, jnp.float32),
        w2=w(ks[1], (H1, H2)),   b2=jnp.full((1, H2), 0.01, jnp.float32),
        w3=w(ks[2], (H2, CODE)), b3=jnp.full((1, CODE), 0.01, jnp.float32),
    )
    noise_net = dict(
        w1x=w(ks[3], (3, H)), w1c=w(ks[4], (CODE, H)), w1t=w(ks[5], (TDIM, H)),
        b1=jnp.full((1, H), 0.01, jnp.float32),
        w2=w(ks[6], (H, H)), b2=jnp.full((1, H), 0.01, jnp.float32),
        w3=w(ks[7], (H, 3)), b3=jnp.zeros((1, 3), jnp.float32),
    )
    betas = jnp.linspace(1e-4, 0.02, NUM_TIMESTEPS, dtype=jnp.float32)
    alphas_cumprod = jnp.cumprod(1.0 - betas)
    return dict(encoder=enc, noise_net=noise_net, alphas_cumprod=alphas_cumprod)


# ---------------- pure-JAX reference (correctness check, exact f32) ----------------

def reference_forward(pcds, params, key):
    fine_gt = pcds["pointcloud"]
    partial = pcds["partial"]
    e = params["encoder"]
    h = jnp.maximum(partial @ e["w1"] + e["b1"], 0.0)
    h = jnp.maximum(h @ e["w2"] + e["b2"], 0.0)
    h = h @ e["w3"] + e["b3"]
    code = jnp.max(h, axis=1)                                              # (B, CODE)

    bsz = partial.shape[0]
    k_t, k_noise = jax.random.split(key)
    t = jax.random.randint(k_t, (bsz,), 0, NUM_TIMESTEPS)
    noise = jax.random.normal(k_noise, fine_gt.shape, jnp.float32)
    acp = params["alphas_cumprod"][t]
    xt = jnp.sqrt(acp)[:, None, None] * fine_gt + jnp.sqrt(1.0 - acp)[:, None, None] * noise
    temb = timestep_embedding(t, TDIM)

    n = params["noise_net"]
    cond = code @ n["w1c"] + temb @ n["w1t"]                               # (B, H)
    hh = jnp.maximum(xt @ n["w1x"] + cond[:, None, :] + n["b1"], 0.0)
    hh = jnp.maximum(hh @ n["w2"] + n["b2"], 0.0)
    eps_pred = hh @ n["w3"] + n["b3"]
    return jnp.mean((eps_pred - noise) ** 2)


# ---------------- main ----------------

if __name__ == "__main__":
    root = jax.random.PRNGKey(0)
    k_params, k_pc, k_partial, k_fwd = jax.random.split(root, 4)

    params = init_params(k_params)
    pcds = {
        "pointcloud": jax.random.normal(k_pc, (B, NPOINTS, 3), jnp.float32),
        "partial": jax.random.normal(k_partial, (B, N_PART, 3), jnp.float32),
    }

    loss = jax.jit(diffu_completion_forward)(pcds, params, k_fwd)
    loss = jax.block_until_ready(loss)

    ref = reference_forward(pcds, params, k_fwd)
    assert jnp.isfinite(loss), "non-finite loss"
    # bf16 MXU operands with f32 accumulation -> small, sign-cancelling error in the mean
    assert jnp.allclose(loss, ref, rtol=3e-2, atol=1e-3), (loss, ref)

    print("KERNEL_OK")
</pallas_src>

<mosaic_0001>
module attributes {stable_mosaic.version = 11 : i64} {
  func.func @_fused_kernel(%arg0: i32, %arg1: i32, %arg2: memref<2xf32, #tpu.memory_space<smem>>, %arg3: memref<2xf32, #tpu.memory_space<smem>>, %arg4: memref<256x3xf32, #tpu.memory_space<vmem>>, %arg5: memref<2x32xf32, #tpu.memory_space<vmem>>, %arg6: memref<3x64xbf16, #tpu.memory_space<vmem>>, %arg7: memref<1x64xf32, #tpu.memory_space<vmem>>, %arg8: memref<64x128xbf16, #tpu.memory_space<vmem>>, %arg9: memref<128x128xbf16, #tpu.memory_space<vmem>>, %arg10: memref<3x128xbf16, #tpu.memory_space<vmem>>, %arg11: memref<128x128xbf16, #tpu.memory_space<vmem>>, %arg12: memref<32x128xbf16, #tpu.memory_space<vmem>>, %arg13: memref<128x128xbf16, #tpu.memory_space<vmem>>, %arg14: memref<128x3xbf16, #tpu.memory_space<vmem>>, %arg15: memref<1x3xf32, #tpu.memory_space<vmem>>, %arg16: memref<4x128xf32, #tpu.memory_space<vmem>>, %arg17: memref<1x128x3xf32, #tpu.memory_space<vmem>>, %arg18: memref<1x128x3xf32, #tpu.memory_space<vmem>>, %arg19: memref<1x1xf32, #tpu.memory_space<vmem>>, %arg20: memref<2x128xf32, #tpu.memory_space<vmem>>) attributes {dimension_semantics = [#tpu.dimension_semantics<arbitrary>, #tpu.dimension_semantics<arbitrary>], iteration_bounds = array<i64: 2, 1>, scalar_prefetch = 0 : i64, scratch_operands = 1 : i64, tpu.core_type = #tpu.core_type<tc>, window_params = [{transform_indices = @transform_0, window_bounds = array<i64: 2>}, {transform_indices = @transform_1, window_bounds = array<i64: 2>}, {pipeline_mode = #tpu.pipeline_mode<synchronous>, transform_indices = @transform_2, window_bounds = array<i64: 256, 3>}, {pipeline_mode = #tpu.pipeline_mode<synchronous>, transform_indices = @transform_3, window_bounds = array<i64: 2, 32>}, {pipeline_mode = #tpu.pipeline_mode<synchronous>, transform_indices = @transform_4, window_bounds = array<i64: 3, 64>}, {pipeline_mode = #tpu.pipeline_mode<synchronous>, transform_indices = @transform_5, window_bounds = array<i64: 1, 64>}, {pipeline_mode = #tpu.pipeline_mode<synchronous>, transform_indices = @transform_6, window_bounds = array<i64: 64, 128>}, {pipeline_mode = #tpu.pipeline_mode<synchronous>, transform_indices = @transform_7, window_bounds = array<i64: 128, 128>}, {pipeline_mode = #tpu.pipeline_mode<synchronous>, transform_indices = @transform_8, window_bounds = array<i64: 3, 128>}, {pipeline_mode = #tpu.pipeline_mode<synchronous>, transform_indices = @transform_9, window_bounds = array<i64: 128, 128>}, {pipeline_mode = #tpu.pipeline_mode<synchronous>, transform_indices = @transform_10, window_bounds = array<i64: 32, 128>}, {pipeline_mode = #tpu.pipeline_mode<synchronous>, transform_indices = @transform_11, window_bounds = array<i64: 128, 128>}, {pipeline_mode = #tpu.pipeline_mode<synchronous>, transform_indices = @transform_12, window_bounds = array<i64: 128, 3>}, {pipeline_mode = #tpu.pipeline_mode<synchronous>, transform_indices = @transform_13, window_bounds = array<i64: 1, 3>}, {pipeline_mode = #tpu.pipeline_mode<synchronous>, transform_indices = @transform_14, window_bounds = array<i64: 4, 128>}, {transform_indices = @transform_15, window_bounds = array<i64: 1, 128, 3>}, {transform_indices = @transform_16, window_bounds = array<i64: 1, 128, 3>}, {pipeline_mode = #tpu.pipeline_mode<synchronous>, transform_indices = @transform_17, window_bounds = array<i64: 1, 1>}]} {
    %c0_i32 = arith.constant 0 : i32
    %0 = arith.cmpi eq, %arg0, %c0_i32 : i32
    %c0_i32_0 = arith.constant 0 : i32
    %1 = arith.cmpi eq, %arg1, %c0_i32_0 : i32
    %2 = arith.andi %0, %1 : i1
    %3 = arith.extui %2 : i1 to i32
    %c0_i32_1 = arith.constant 0 : i32
    %4 = arith.cmpi ne, %3, %c0_i32_1 : i32
    scf.if %4 {
      %c0_27 = arith.constant 0 : index
      %c0_28 = arith.constant 0 : index
      %54 = vector.load %arg4[%c0_27, %c0_28] : memref<256x3xf32, #tpu.memory_space<vmem>>, vector<256x3xf32>
      %55 = arith.truncf %54 : vector<256x3xf32> to vector<256x3xbf16>
      %c0_29 = arith.constant 0 : index
      %c0_30 = arith.constant 0 : index
      %56 = vector.load %arg6[%c0_29, %c0_30] : memref<3x64xbf16, #tpu.memory_space<vmem>>, vector<3x64xbf16>
      %cst_31 = arith.constant dense<0.000000e+00> : vector<256x64xf32>
      %57 = tpu.matmul %55, %56, %cst_31 {dimension_numbers = #tpu.dot_dimension_numbers<[1], [0], [0], [1], [0, 0, 1, 1], [], []>} : vector<256x3xbf16>, vector<3x64xbf16>, vector<256x64xf32> -> vector<256x64xf32>
      %c0_32 = arith.constant 0 : index
      %c0_33 = arith.constant 0 : index
      %58 = vector.load %arg7[%c0_32, %c0_33] : memref<1x64xf32, #tpu.memory_space<vmem>>, vector<1x64xf32>
      %59 = vector.broadcast %58 : vector<1x64xf32> to vector<256x64xf32>
      %60 = arith.addf %57, %59 : vector<256x64xf32>
      %cst_34 = arith.constant 0.000000e+00 : f32
      %61 = vector.broadcast %cst_34 : f32 to vector<256x64xf32>
      %62 = arith.maximumf %60, %61 : vector<256x64xf32>
      %63 = arith.truncf %62 : vector<256x64xf32> to vector<256x64xbf16>
      %c0_35 = arith.constant 0 : index
      %c0_36 = arith.constant 0 : index
      %64 = vector.load %arg8[%c0_35, %c0_36] : memref<64x128xbf16, #tpu.memory_space<vmem>>, vector<64x128xbf16>
      %cst_37 = arith.constant dense<0.000000e+00> : vector<256x128xf32>
      %65 = tpu.matmul %63, %64, %cst_37 {dimension_numbers = #tpu.dot_dimension_numbers<[1], [0], [0], [1], [0, 0, 1, 1], [], []>} : vector<256x64xbf16>, vector<64x128xbf16>, vector<256x128xf32> -> vector<256x128xf32>
      %c0_38 = arith.constant 0 : index
      %c0_39 = arith.constant 0 : index
      %66 = vector.load %arg16[%c0_38, %c0_39] : memref<4x128xf32, #tpu.memory_space<vmem>>, vector<1x128xf32>
      %67 = vector.broadcast %66 : vector<1x128xf32> to vector<256x128xf32>
      %68 = arith.addf %65, %67 : vector<256x128xf32>
      %cst_40 = arith.constant 0.000000e+00 : f32
      %69 = vector.broadcast %cst_40 : f32 to vector<256x128xf32>
      %70 = arith.maximumf %68, %69 : vector<256x128xf32>
      %71 = arith.truncf %70 : vector<256x128xf32> to vector<256x128xbf16>
      %c0_41 = arith.constant 0 : index
      %c0_42 = arith.constant 0 : index
      %72 = vector.load %arg9[%c0_41, %c0_42] : memref<128x128xbf16, #tpu.memory_space<vmem>>, vector<128x128xbf16>
      %cst_43 = arith.constant dense<0.000000e+00> : vector<256x128xf32>
      %73 = tpu.matmul %71, %72, %cst_43 {dimension_numbers = #tpu.dot_dimension_numbers<[1], [0], [0], [1], [0, 0, 1, 1], [], []>} : vector<256x128xbf16>, vector<128x128xbf16>, vector<256x128xf32> -> vector<256x128xf32>
      %c1 = arith.constant 1 : index
      %c0_44 = arith.constant 0 : index
      %74 = vector.load %arg16[%c1, %c0_44] : memref<4x128xf32, #tpu.memory_space<vmem>>, vector<1x128xf32>
      %75 = vector.broadcast %74 : vector<1x128xf32> to vector<256x128xf32>
      %76 = arith.addf %73, %75 : vector<256x128xf32>
      %77 = vector.shape_cast %76 : vector<256x128xf32> to vector<2x128x128xf32>
      %cst_45 = arith.constant dense<0xFF800000> : vector<2x128xf32>
      %78 = vector.multi_reduction <maximumf>, %77, %cst_45 [1] : vector<2x128x128xf32> to vector<2x128xf32>
      %79 = arith.truncf %78 : vector<2x128xf32> to vector<2x128xbf16>
      %c0_46 = arith.constant 0 : index
      %c0_47 = arith.constant 0 : index
      %80 = vector.load %arg11[%c0_46, %c0_47] : memref<128x128xbf16, #tpu.memory_space<vmem>>, vector<128x128xbf16>
      %cst_48 = arith.constant dense<0.000000e+00> : vector<2x128xf32>
      %81 = tpu.matmul %79, %80, %cst_48 {dimension_numbers = #tpu.dot_dimension_numbers<[1], [0], [0], [1], [0, 0, 1, 1], [], []>} : vector<2x128xbf16>, vector<128x128xbf16>, vector<2x128xf32> -> vector<2x128xf32>
      %c0_49 = arith.constant 0 : index
      %c0_50 = arith.constant 0 : index
      %82 = vector.load %arg5[%c0_49, %c0_50] : memref<2x32xf32, #tpu.memory_space<vmem>>, vector<2x32xf32>
      %83 = arith.truncf %82 : vector<2x32xf32> to vector<2x32xbf16>
      %c0_51 = arith.constant 0 : index
      %c0_52 = arith.constant 0 : index
      %84 = vector.load %arg12[%c0_51, %c0_52] : memref<32x128xbf16, #tpu.memory_space<vmem>>, vector<32x128xbf16>
      %cst_53 = arith.constant dense<0.000000e+00> : vector<2x128xf32>
      %85 = tpu.matmul %83, %84, %cst_53 {dimension_numbers = #tpu.dot_dimension_numbers<[1], [0], [0], [1], [0, 0, 1, 1], [], []>} : vector<2x32xbf16>, vector<32x128xbf16>, vector<2x128xf32> -> vector<2x128xf32>
      %86 = arith.addf %81, %85 : vector<2x128xf32>
      %c0_54 = arith.constant 0 : index
      %c0_55 = arith.constant 0 : index
      %87 = vector.load %arg20[%c0_54, %c0_55] : memref<2x128xf32, #tpu.memory_space<vmem>>, vector<2x128xf32>
      tpu.vector_store %arg20[%c0_54, %c0_55], %86 {strides = array<i32>} : memref<2x128xf32, #tpu.memory_space<vmem>>, vector<2x128xf32>,
      %cst_56 = arith.constant 0.000000e+00 : f32
      %88 = vector.broadcast %cst_56 : f32 to vector<1x1xf32>
      %c0_57 = arith.constant 0 : index
      %c0_58 = arith.constant 0 : index
      %89 = vector.load %arg19[%c0_57, %c0_58] : memref<1x1xf32, #tpu.memory_space<vmem>>, vector<1x1xf32>
      tpu.vector_store %arg19[%c0_57, %c0_58], %88 {strides = array<i32>} : memref<1x1xf32, #tpu.memory_space<vmem>>, vector<1x1xf32>,
    } else {
    }
    %c0 = arith.constant 0 : index
    %c0_2 = arith.constant 0 : index
    %c0_3 = arith.constant 0 : index
    %5 = vector.load %arg17[%c0, %c0_2, %c0_3] : memref<1x128x3xf32, #tpu.memory_space<vmem>>, vector<1x128x3xf32>
    %6 = vector.shape_cast %5 : vector<1x128x3xf32> to vector<128x3xf32>
    %c0_4 = arith.constant 0 : index
    %c0_5 = arith.constant 0 : index
    %c0_6 = arith.constant 0 : index
    %7 = vector.load %arg18[%c0_4, %c0_5, %c0_6] : memref<1x128x3xf32, #tpu.memory_space<vmem>>, vector<1x128x3xf32>
    %8 = vector.shape_cast %7 : vector<1x128x3xf32> to vector<128x3xf32>
    %9 = arith.index_cast %arg0 : i32 to index
    %10 = memref.load %arg2[%9] : memref<2xf32, #tpu.memory_space<smem>>
    %11 = vector.broadcast %10 : f32 to vector<128x3xf32>
    %12 = arith.mulf %11, %6 : vector<128x3xf32>
    %13 = arith.index_cast %arg0 : i32 to index
    %14 = memref.load %arg3[%13] : memref<2xf32, #tpu.memory_space<smem>>
    %15 = vector.broadcast %14 : f32 to vector<128x3xf32>
    %16 = arith.mulf %15, %8 : vector<128x3xf32>
    %17 = arith.addf %12, %16 : vector<128x3xf32>
    %18 = arith.index_cast %arg0 : i32 to index
    %c0_7 = arith.constant 0 : index
    %19 = vector.load %arg20[%18, %c0_7] : memref<2x128xf32, #tpu.memory_space<vmem>>, vector<1x128xf32>
    %20 = arith.truncf %17 : vector<128x3xf32> to vector<128x3xbf16>
    %c0_8 = arith.constant 0 : index
    %c0_9 = arith.constant 0 : index
    %21 = vector.load %arg10[%c0_8, %c0_9] : memref<3x128xbf16, #tpu.memory_space<vmem>>, vector<3x128xbf16>
    %cst = arith.constant dense<0.000000e+00> : vector<128x128xf32>
    %22 = tpu.matmul %20, %21, %cst {dimension_numbers = #tpu.dot_dimension_numbers<[1], [0], [0], [1], [0, 0, 1, 1], [], []>} : vector<128x3xbf16>, vector<3x128xbf16>, vector<128x128xf32> -> vector<128x128xf32>
    %23 = vector.broadcast %19 : vector<1x128xf32> to vector<128x128xf32>
    %24 = arith.addf %22, %23 : vector<128x128xf32>
    %c2 = arith.constant 2 : index
    %c0_10 = arith.constant 0 : index
    %25 = vector.load %arg16[%c2, %c0_10] : memref<4x128xf32, #tpu.memory_space<vmem>>, vector<1x128xf32>
    %26 = vector.broadcast %25 : vector<1x128xf32> to vector<128x128xf32>
    %27 = arith.addf %24, %26 : vector<128x128xf32>
    %cst_11 = arith.constant 0.000000e+00 : f32
    %28 = vector.broadcast %cst_11 : f32 to vector<128x128xf32>
    %29 = arith.maximumf %27, %28 : vector<128x128xf32>
    %30 = arith.truncf %29 : vector<128x128xf32> to vector<128x128xbf16>
    %c0_12 = arith.constant 0 : index
    %c0_13 = arith.constant 0 : index
    %31 = vector.load %arg13[%c0_12, %c0_13] : memref<128x128xbf16, #tpu.memory_space<vmem>>, vector<128x128xbf16>
    %cst_14 = arith.constant dense<0.000000e+00> : vector<128x128xf32>
    %32 = tpu.matmul %30, %31, %cst_14 {dimension_numbers = #tpu.dot_dimension_numbers<[1], [0], [0], [1], [0, 0, 1, 1], [], []>} : vector<128x128xbf16>, vector<128x128xbf16>, vector<128x128xf32> -> vector<128x128xf32>
    %c3 = arith.constant 3 : index
    %c0_15 = arith.constant 0 : index
    %33 = vector.load %arg16[%c3, %c0_15] : memref<4x128xf32, #tpu.memory_space<vmem>>, vector<1x128xf32>
    %34 = vector.broadcast %33 : vector<1x128xf32> to vector<128x128xf32>
    %35 = arith.addf %32, %34 : vector<128x128xf32>
    %cst_16 = arith.constant 0.000000e+00 : f32
    %36 = vector.broadcast %cst_16 : f32 to vector<128x128xf32>
    %37 = arith.maximumf %35, %36 : vector<128x128xf32>
    %38 = arith.truncf %37 : vector<128x128xf32> to vector<128x128xbf16>
    %c0_17 = arith.constant 0 : index
    %c0_18 = arith.constant 0 : index
    %39 = vector.load %arg14[%c0_17, %c0_18] : memref<128x3xbf16, #tpu.memory_space<vmem>>, vector<128x3xbf16>
    %cst_19 = arith.constant dense<0.000000e+00> : vector<128x3xf32>
    %40 = tpu.matmul %38, %39, %cst_19 {dimension_numbers = #tpu.dot_dimension_numbers<[1], [0], [0], [1], [0, 0, 1, 1], [], []>} : vector<128x128xbf16>, vector<128x3xbf16>, vector<128x3xf32> -> vector<128x3xf32>
    %c0_20 = arith.constant 0 : index
    %c0_21 = arith.constant 0 : index
    %41 = vector.load %arg15[%c0_20, %c0_21] : memref<1x3xf32, #tpu.memory_space<vmem>>, vector<1x3xf32>
    %42 = vector.broadcast %41 : vector<1x3xf32> to vector<128x3xf32>
    %43 = arith.addf %40, %42 : vector<128x3xf32>
    %44 = arith.subf %43, %8 : vector<128x3xf32>
    %c0_22 = arith.constant 0 : index
    %c0_23 = arith.constant 0 : index
    %45 = vector.load %arg19[%c0_22, %c0_23] : memref<1x1xf32, #tpu.memory_space<vmem>>, vector<1x1xf32>
    %46 = arith.mulf %44, %44 : vector<128x3xf32>
    %47 = vector.shape_cast %46 : vector<128x3xf32> to vector<1x128x3xf32>
    %cst_24 = arith.constant dense<0.000000e+00> : vector<1xf32>
    %48 = vector.multi_reduction <add>, %47, %cst_24 [1, 2] : vector<1x128x3xf32> to vector<1xf32>
    %49 = vector.shape_cast %48 : vector<1xf32> to vector<1x1x1xf32>
    %50 = vector.extract %49[0, 0, 0] : f32 from vector<1x1x1xf32>
    %51 = vector.broadcast %50 : f32 to vector<1x1xf32>
    %52 = arith.addf %45, %51 : vector<1x1xf32>
    %c0_25 = arith.constant 0 : index
    %c0_26 = arith.constant 0 : index
    %53 = vector.load %arg19[%c0_25, %c0_26] : memref<1x1xf32, #tpu.memory_space<vmem>>, vector<1x1xf32>
    tpu.vector_store %arg19[%c0_25, %c0_26], %52 {strides = array<i32>} : memref<1x1xf32, #tpu.memory_space<vmem>>, vector<1x1xf32>,
    return
  }
  func.func @transform_0(%arg0: i32, %arg1: i32) -> i32 {
    %c0_i32 = arith.constant 0 : i32
    %c0_i32_0 = arith.constant 0 : i32
    return %c0_i32 : i32
  }
  func.func @transform_1(%arg0: i32, %arg1: i32) -> i32 {
    %c0_i32 = arith.constant 0 : i32
    %c0_i32_0 = arith.constant 0 : i32
    return %c0_i32 : i32
  }
  func.func @transform_2(%arg0: i32, %arg1: i32) -> (i32, i32) {
    %c0_i32 = arith.constant 0 : i32
    %c0_i32_0 = arith.constant 0 : i32
    %c0_i32_1 = arith.constant 0 : i32
    return %c0_i32, %c0_i32_0 : i32, i32
  }
  func.func @transform_3(%arg0: i32, %arg1: i32) -> (i32, i32) {
    %c0_i32 = arith.constant 0 : i32
    %c0_i32_0 = arith.constant 0 : i32
    %c0_i32_1 = arith.constant 0 : i32
    return %c0_i32, %c0_i32_0 : i32, i32
  }
  func.func @transform_4(%arg0: i32, %arg1: i32) -> (i32, i32) {
    %c0_i32 = arith.constant 0 : i32
    %c0_i32_0 = arith.constant 0 : i32
    %c0_i32_1 = arith.constant 0 : i32
    return %c0_i32, %c0_i32_0 : i32, i32
  }
  func.func @transform_5(%arg0: i32, %arg1: i32) -> (i32, i32) {
    %c0_i32 = arith.constant 0 : i32
    %c0_i32_0 = arith.constant 0 : i32
    %c0_i32_1 = arith.constant 0 : i32
    return %c0_i32, %c0_i32_0 : i32, i32
  }
  func.func @transform_6(%arg0: i32, %arg1: i32) -> (i32, i32) {
    %c0_i32 = arith.constant 0 : i32
    %c0_i32_0 = arith.constant 0 : i32
    %c0_i32_1 = arith.constant 0 : i32
    return %c0_i32, %c0_i32_0 : i32, i32
  }
  func.func @transform_7(%arg0: i32, %arg1: i32) -> (i32, i32) {
    %c0_i32 = arith.constant 0 : i32
    %c0_i32_0 = arith.constant 0 : i32
    %c0_i32_1 = arith.constant 0 : i32
    return %c0_i32, %c0_i32_0 : i32, i32
  }
  func.func @transform_8(%arg0: i32, %arg1: i32) -> (i32, i32) {
    %c0_i32 = arith.constant 0 : i32
    %c0_i32_0 = arith.constant 0 : i32
    %c0_i32_1 = arith.constant 0 : i32
    return %c0_i32, %c0_i32_0 : i32, i32
  }
  func.func @transform_9(%arg0: i32, %arg1: i32) -> (i32, i32) {
    %c0_i32 = arith.constant 0 : i32
    %c0_i32_0 = arith.constant 0 : i32
    %c0_i32_1 = arith.constant 0 : i32
    return %c0_i32, %c0_i32_0 : i32, i32
  }
  func.func @transform_10(%arg0: i32, %arg1: i32) -> (i32, i32) {
    %c0_i32 = arith.constant 0 : i32
    %c0_i32_0 = arith.constant 0 : i32
    %c0_i32_1 = arith.constant 0 : i32
    return %c0_i32, %c0_i32_0 : i32, i32
  }
  func.func @transform_11(%arg0: i32, %arg1: i32) -> (i32, i32) {
    %c0_i32 = arith.constant 0 : i32
    %c0_i32_0 = arith.constant 0 : i32
    %c0_i32_1 = arith.constant 0 : i32
    return %c0_i32, %c0_i32_0 : i32, i32
  }
  func.func @transform_12(%arg0: i32, %arg1: i32) -> (i32, i32) {
    %c0_i32 = arith.constant 0 : i32
    %c0_i32_0 = arith.constant 0 : i32
    %c0_i32_1 = arith.constant 0 : i32
    return %c0_i32, %c0_i32_0 : i32, i32
  }
  func.func @transform_13(%arg0: i32, %arg1: i32) -> (i32, i32) {
    %c0_i32 = arith.constant 0 : i32
    %c0_i32_0 = arith.constant 0 : i32
    %c0_i32_1 = arith.constant 0 : i32
    return %c0_i32, %c0_i32_0 : i32, i32
  }
  func.func @transform_14(%arg0: i32, %arg1: i32) -> (i32, i32) {
    %c0_i32 = arith.constant 0 : i32
    %c0_i32_0 = arith.constant 0 : i32
    %c0_i32_1 = arith.constant 0 : i32
    return %c0_i32, %c0_i32_0 : i32, i32
  }
  func.func @transform_15(%arg0: i32, %arg1: i32) -> (i32, i32, i32) {
    %c0_i32 = arith.constant 0 : i32
    %c0_i32_0 = arith.constant 0 : i32
    return %arg0, %arg1, %c0_i32 : i32, i32, i32
  }
  func.func @transform_16(%arg0: i32, %arg1: i32) -> (i32, i32, i32) {
    %c0_i32 = arith.constant 0 : i32
    %c0_i32_0 = arith.constant 0 : i32
    return %arg0, %arg1, %c0_i32 : i32, i32, i32
  }
  func.func @transform_17(%arg0: i32, %arg1: i32) -> (i32, i32) {
    %c0_i32 = arith.constant 0 : i32
    %c0_i32_0 = arith.constant 0 : i32
    %c0_i32_1 = arith.constant 0 : i32
    return %c0_i32, %c0_i32_0 : i32, i32
  }
}

</mosaic_0001>

<llo_original>
// kernel: diffu_completion_forward.21
$region0: #{diffu_completion_forward.21}
  #allocation0 [shape = 'u32[]', space=smem, size = 0x4, offset = 0x4, fixed_abs, tag = 'smem constant byte address 0x4 - core index']
  #allocation1 [shape = 'u32[144,128]{1,0:T(1,128)}', space=vmem, size = 0x12000, scoped, tag = 'internal scratch']
  #allocation2 [shape = 'f32[2,128]{1,0:T(2,128)}', space=vmem, size = 0x400, scoped, tag = 'scratch operand']
  %s0 = inlined_call_operand.vmem [shape: f32[2], index: 0, kind: input, shape index: {}]
  %s1 = inlined_call_operand.vmem [shape: f32[2], index: 1, kind: input, shape index: {}]
  %s2 = inlined_call_operand.vmem [shape: f32[256,3], index: 2, kind: input, shape index: {}]
  %s3 = inlined_call_operand.vmem [shape: f32[2,32], index: 3, kind: input, shape index: {}]
  %s4 = inlined_call_operand.vmem [shape: bf16[3,64], index: 4, kind: input, shape index: {}]
  %s5 = inlined_call_operand.vmem [shape: f32[1,64], index: 5, kind: input, shape index: {}]
  %s6 = inlined_call_operand.vmem [shape: bf16[64,128], index: 6, kind: input, shape index: {}]
  %s7 = inlined_call_operand.vmem [shape: bf16[128,128], index: 7, kind: input, shape index: {}]
  %s8 = inlined_call_operand.vmem [shape: bf16[3,128], index: 8, kind: input, shape index: {}]
  %s9 = inlined_call_operand.vmem [shape: bf16[128,128], index: 9, kind: input, shape index: {}]
  %s10 = inlined_call_operand.vmem [shape: bf16[32,128], index: 10, kind: input, shape index: {}]
  %s11 = inlined_call_operand.vmem [shape: bf16[128,128], index: 11, kind: input, shape index: {}]
  %s12 = inlined_call_operand.vmem [shape: bf16[128,3], index: 12, kind: input, shape index: {}]
  %s13 = inlined_call_operand.vmem [shape: f32[1,3], index: 13, kind: input, shape index: {}]
  %s14 = inlined_call_operand.vmem [shape: f32[4,128], index: 14, kind: input, shape index: {}]
  %s15 = inlined_call_operand.vmem [shape: f32[2,128,3], index: 15, kind: input, shape index: {}]
  %s16 = inlined_call_operand.vmem [shape: f32[2,128,3], index: 16, kind: input, shape index: {}]
  %s17 = inlined_call_operand.hbm [shape: f32[1,1], index: 17, kind: output, shape index: {}]
  %s18 = sld [smem:[#allocation0]]
  $region113: #{diffu_completion_forward.21} parent=0
    _
  %s20 = ssub.s32 1, %s18
  %s21 = scalar_select 0, %s20, %s18
  $region1: #{diffu_completion_forward.21} parent=0
    #allocation3 [shape = 'u8[512]{0}', space=smem, size = 0x200, scoped, tag = 'input window, operand 0, single buffered']
    #allocation4 [shape = 's32[2]{0}', space=sflag, size = 0x8, scoped, tag = 'scoped memory for diffu_completion_forward.21']
    #allocation5 [shape = 's32[2]{0}', space=sflag, size = 0x8, scoped, tag = 'scoped memory for diffu_completion_forward.21']
    #allocation6 [shape = 'u8[512]{0}', space=smem, size = 0x200, scoped, tag = 'input window, operand 1, single buffered']
    #allocation7 [shape = 's32[1]{0}', space=sflag, size = 0x4, scoped, tag = 'scoped memory for diffu_completion_forward.21']
    #allocation8 [shape = 'u8[512]{0}', space=vmem, size = 0x400, scoped, tag = 'output window, operand 0, single buffered']
    %22 = vsyncpa [#allocation5], 0
    %23 = vsyncpa [#allocation7], 0
    %24 = vsyncpa [#allocation4], 0
    loop: start=0, step=1, limit=4
    $region2: #{diffu_completion_forward.21} parent=1 // loop_pre_header
      _
    $region3: #{diffu_completion_forward.21} parent=1 // loop_header
      %s26 = sphi 0, %s30
      %p27 = scmp.ge.s32.totalorder %s26, 4
      %s33 = sphi 0, %s45
      %s34 = sphi 0, %s41
      %s35 = sphi 0, %s33
      %s36 = sphi 0, %s34
      %s37 = sphi 0, %s35
      %s38 = sphi 0, %s36
      %s46 = sphi 0, %s46
      %s48 = sphi 0, %s46
      %s49 = sphi 0, %s48
      %s63 = sphi 0, %s49
      %s67 = sphi 0, %s67
      %s69 = sphi 0, %s67
      %s70 = sphi 0, %s69
      %s84 = sphi 0, %s70
      %s88 = sphi 0, %s88
      %s90 = sphi 0, %s88
      %s91 = sphi 0, %s90
      %s105 = sphi 0, %s91
      %s109 = sphi 0, %s109
      %s111 = sphi 0, %s109
      %s112 = sphi 0, %s111
      %s126 = sphi 0, %s112
      %s130 = sphi 0, %s130
      %s132 = sphi 0, %s130
      %s133 = sphi 0, %s132
      %s147 = sphi 0, %s133
      %s151 = sphi 0, %s151
      %s153 = sphi 0, %s151
      %s154 = sphi 0, %s153
      %s168 = sphi 0, %s154
      %s172 = sphi 0, %s172
      %s174 = sphi 0, %s172
      %s175 = sphi 0, %s174
      %s189 = sphi 0, %s175
      %s193 = sphi 0, %s193
      %s195 = sphi 0, %s193
      %s196 = sphi 0, %s195
      %s210 = sphi 0, %s196
      %s214 = sphi 0, %s214
      %s216 = sphi 0, %s214
      %s217 = sphi 0, %s216
      %s231 = sphi 0, %s217
      %s235 = sphi 0, %s235
      %s237 = sphi 0, %s235
      %s238 = sphi 0, %s237
      %s252 = sphi 0, %s238
      %s256 = sphi 0, %s256
      %s258 = sphi 0, %s256
      %s259 = sphi 0, %s258
      %s273 = sphi 0, %s259
      %s277 = sphi 0, %s277
      %s279 = sphi 0, %s277
      %s280 = sphi 0, %s279
      %s294 = sphi 0, %s280
      %s298 = sphi 0, %s298
      %s300 = sphi 0, %s298
      %s301 = sphi 0, %s300
      %s315 = sphi 0, %s301
      %s319 = sphi 0, %s319
      %s321 = sphi 0, %s319
      %s322 = sphi 0, %s321
      %s336 = sphi 0, %s322
      %s340 = sphi 0, %s340
      %s342 = sphi 0, %s340
      %s343 = sphi 0, %s342
      %s357 = sphi 0, %s343
      %s365 = sphi 0, %s367
      %s368 = sphi 0, %s365
      %s369 = sphi 0, %s368
      %s385 = sphi 0, %s369
      %s393 = sphi 0, %s395
      %s396 = sphi 0, %s393
      %s397 = sphi 0, %s396
      %s413 = sphi 0, %s397
      %s417 = sphi 0, %s417
      %s419 = sphi 0, %s417
      %s420 = sphi 0, %s419
      %s434 = sphi 0, %s420
    $region4: #{diffu_completion_forward.21} parent=1 // loop_header_branch
      %29 = sbr.rel (%p27) target = $region8
    $region5: #{diffu_completion_forward.21} parent=1 // loop_body
      %s31 = ssub.s32 %s26, 1
      %s32 = ssub.s32 %s26, 2
      %s39 = sadd.s32 1, %s34
      %p40 = scmp.ge.s32.totalorder %s39, 1
      %s41 = scalar_select %p40, 0, %s39
      %s42 = sadd.s32 1, %s33
      %s43 = scalar_select %p40, %s42, %s33
      %p44 = scmp.ge.s32.totalorder %s43, 2
      %s45 = scalar_select %p44, 0, %s43
      %s47 = sadd.s32 %s46, 1
      %p50 = scmp.eq.s32.totalorder %s26, 1
      %p51 = scmp.ne.s32.totalorder %s46, %s48
      %p52 = scmp.eq.s32.totalorder %s26, 0
      %p53 = por %p51, %p52
      %p54 = scmp.ne.s32.totalorder %s46, %s48
      %p55 = scmp.eq.s32.totalorder %s31, 1
      %p56 = por %p54, %p55
      %p57 = scmp.ne.s32.totalorder %s48, %s49
      %p58 = scmp.eq.s32.totalorder %s31, 0
      %p59 = por %p57, %p58
      %p60 = scmp.ne.s32.totalorder %s48, %s49
      %p61 = scmp.eq.s32.totalorder %s32, 1
      %p62 = por %p60, %p61
      %p64 = scmp.ne.s32.totalorder %s49, %s63
      %p65 = scmp.eq.s32.totalorder %s32, 0
      %p66 = por %p64, %p65
      %s68 = sadd.s32 %s67, 1
      %p71 = scmp.eq.s32.totalorder %s26, 1
      %p72 = scmp.ne.s32.totalorder %s67, %s69
      %p73 = scmp.eq.s32.totalorder %s26, 0
      %p74 = por %p72, %p73
      %p75 = scmp.ne.s32.totalorder %s67, %s69
      %p76 = scmp.eq.s32.totalorder %s31, 1
      %p77 = por %p75, %p76
      %p78 = scmp.ne.s32.totalorder %s69, %s70
      %p79 = scmp.eq.s32.totalorder %s31, 0
      %p80 = por %p78, %p79
      %p81 = scmp.ne.s32.totalorder %s69, %s70
      %p82 = scmp.eq.s32.totalorder %s32, 1
      %p83 = por %p81, %p82
      %p85 = scmp.ne.s32.totalorder %s70, %s84
      %p86 = scmp.eq.s32.totalorder %s32, 0
      %p87 = por %p85, %p86
      %s89 = sadd.s32 %s88, 1
      %p92 = scmp.eq.s32.totalorder %s26, 1
      %p93 = scmp.ne.s32.totalorder %s88, %s90
      %p94 = scmp.eq.s32.totalorder %s26, 0
      %p95 = por %p93, %p94
      %p96 = scmp.ne.s32.totalorder %s88, %s90
      %p97 = scmp.eq.s32.totalorder %s31, 1
      %p98 = por %p96, %p97
      %p99 = scmp.ne.s32.totalorder %s90, %s91
      %p100 = scmp.eq.s32.totalorder %s31, 0
      %p101 = por %p99, %p100
      %p102 = scmp.ne.s32.totalorder %s90, %s91
      %p103 = scmp.eq.s32.totalorder %s32, 1
      %p104 = por %p102, %p103
      %p106 = scmp.ne.s32.totalorder %s91, %s105
      %p107 = scmp.eq.s32.totalorder %s32, 0
      %p108 = por %p106, %p107
      %s110 = sadd.s32 %s109, 1
      %p113 = scmp.eq.s32.totalorder %s26, 1
      %p114 = scmp.ne.s32.totalorder %s109, %s111
      %p115 = scmp.eq.s32.totalorder %s26, 0
      %p116 = por %p114, %p115
      %p117 = scmp.ne.s32.totalorder %s109, %s111
      %p118 = scmp.eq.s32.totalorder %s31, 1
      %p119 = por %p117, %p118
      %p120 = scmp.ne.s32.totalorder %s111, %s112
      %p121 = scmp.eq.s32.totalorder %s31, 0
      %p122 = por %p120, %p121
      %p123 = scmp.ne.s32.totalorder %s111, %s112
      %p124 = scmp.eq.s32.totalorder %s32, 1
      %p125 = por %p123, %p124
      %p127 = scmp.ne.s32.totalorder %s112, %s126
      %p128 = scmp.eq.s32.totalorder %s32, 0
      %p129 = por %p127, %p128
      %s131 = sadd.s32 %s130, 1
      %p134 = scmp.eq.s32.totalorder %s26, 1
      %p135 = scmp.ne.s32.totalorder %s130, %s132
      %p136 = scmp.eq.s32.totalorder %s26, 0
      %p137 = por %p135, %p136
      %p138 = scmp.ne.s32.totalorder %s130, %s132
      %p139 = scmp.eq.s32.totalorder %s31, 1
      %p140 = por %p138, %p139
      %p141 = scmp.ne.s32.totalorder %s132, %s133
      %p142 = scmp.eq.s32.totalorder %s31, 0
      %p143 = por %p141, %p142
      %p144 = scmp.ne.s32.totalorder %s132, %s133
      %p145 = scmp.eq.s32.totalorder %s32, 1
      %p146 = por %p144, %p145
      %p148 = scmp.ne.s32.totalorder %s133, %s147
      %p149 = scmp.eq.s32.totalorder %s32, 0
      %p150 = por %p148, %p149
      %s152 = sadd.s32 %s151, 1
      %p155 = scmp.eq.s32.totalorder %s26, 1
      %p156 = scmp.ne.s32.totalorder %s151, %s153
      %p157 = scmp.eq.s32.totalorder %s26, 0
      %p158 = por %p156, %p157
      %p159 = scmp.ne.s32.totalorder %s151, %s153
      %p160 = scmp.eq.s32.totalorder %s31, 1
      %p161 = por %p159, %p160
      %p162 = scmp.ne.s32.totalorder %s153, %s154
      %p163 = scmp.eq.s32.totalorder %s31, 0
      %p164 = por %p162, %p163
      %p165 = scmp.ne.s32.totalorder %s153, %s154
      %p166 = scmp.eq.s32.totalorder %s32, 1
      %p167 = por %p165, %p166
      %p169 = scmp.ne.s32.totalorder %s154, %s168
      %p170 = scmp.eq.s32.totalorder %s32, 0
      %p171 = por %p169, %p170
      %s173 = sadd.s32 %s172, 1
      %p176 = scmp.eq.s32.totalorder %s26, 1
      %p177 = scmp.ne.s32.totalorder %s172, %s174
      %p178 = scmp.eq.s32.totalorder %s26, 0
      %p179 = por %p177, %p178
      %p180 = scmp.ne.s32.totalorder %s172, %s174
      %p181 = scmp.eq.s32.totalorder %s31, 1
      %p182 = por %p180, %p181
      %p183 = scmp.ne.s32.totalorder %s174, %s175
      %p184 = scmp.eq.s32.totalorder %s31, 0
      %p185 = por %p183, %p184
      %p186 = scmp.ne.s32.totalorder %s174, %s175
      %p187 = scmp.eq.s32.totalorder %s32, 1
      %p188 = por %p186, %p187
      %p190 = scmp.ne.s32.totalorder %s175, %s189
      %p191 = scmp.eq.s32.totalorder %s32, 0
      %p192 = por %p190, %p191
      %s194 = sadd.s32 %s193, 1
      %p197 = scmp.eq.s32.totalorder %s26, 1
      %p198 = scmp.ne.s32.totalorder %s193, %s195
      %p199 = scmp.eq.s32.totalorder %s26, 0
      %p200 = por %p198, %p199
      %p201 = scmp.ne.s32.totalorder %s193, %s195
      %p202 = scmp.eq.s32.totalorder %s31, 1
      %p203 = por %p201, %p202
      %p204 = scmp.ne.s32.totalorder %s195, %s196
      %p205 = scmp.eq.s32.totalorder %s31, 0
      %p206 = por %p204, %p205
      %p207 = scmp.ne.s32.totalorder %s195, %s196
      %p208 = scmp.eq.s32.totalorder %s32, 1
      %p209 = por %p207, %p208
      %p211 = scmp.ne.s32.totalorder %s196, %s210
      %p212 = scmp.eq.s32.totalorder %s32, 0
      %p213 = por %p211, %p212
      %s215 = sadd.s32 %s214, 1
      %p218 = scmp.eq.s32.totalorder %s26, 1
      %p219 = scmp.ne.s32.totalorder %s214, %s216
      %p220 = scmp.eq.s32.totalorder %s26, 0
      %p221 = por %p219, %p220
      %p222 = scmp.ne.s32.totalorder %s214, %s216
      %p223 = scmp.eq.s32.totalorder %s31, 1
      %p224 = por %p222, %p223
      %p225 = scmp.ne.s32.totalorder %s216, %s217
      %p226 = scmp.eq.s32.totalorder %s31, 0
      %p227 = por %p225, %p226
      %p228 = scmp.ne.s32.totalorder %s216, %s217
      %p229 = scmp.eq.s32.totalorder %s32, 1
      %p230 = por %p228, %p229
      %p232 = scmp.ne.s32.totalorder %s217, %s231
      %p233 = scmp.eq.s32.totalorder %s32, 0
      %p234 = por %p232, %p233
      %s236 = sadd.s32 %s235, 1
      %p239 = scmp.eq.s32.totalorder %s26, 1
      %p240 = scmp.ne.s32.totalorder %s235, %s237
      %p241 = scmp.eq.s32.totalorder %s26, 0
      %p242 = por %p240, %p241
      %p243 = scmp.ne.s32.totalorder %s235, %s237
      %p244 = scmp.eq.s32.totalorder %s31, 1
      %p245 = por %p243, %p244
      %p246 = scmp.ne.s32.totalorder %s237, %s238
      %p247 = scmp.eq.s32.totalorder %s31, 0
      %p248 = por %p246, %p247
      %p249 = scmp.ne.s32.totalorder %s237, %s238
      %p250 = scmp.eq.s32.totalorder %s32, 1
      %p251 = por %p249, %p250
      %p253 = scmp.ne.s32.totalorder %s238, %s252
      %p254 = scmp.eq.s32.totalorder %s32, 0
      %p255 = por %p253, %p254
      %s257 = sadd.s32 %s256, 1
      %p260 = scmp.eq.s32.totalorder %s26, 1
      %p261 = scmp.ne.s32.totalorder %s256, %s258
      %p262 = scmp.eq.s32.totalorder %s26, 0
      %p263 = por %p261, %p262
      %p264 = scmp.ne.s32.totalorder %s256, %s258
      %p265 = scmp.eq.s32.totalorder %s31, 1
      %p266 = por %p264, %p265
      %p267 = scmp.ne.s32.totalorder %s258, %s259
      %p268 = scmp.eq.s32.totalorder %s31, 0
      %p269 = por %p267, %p268
      %p270 = scmp.ne.s32.totalorder %s258, %s259
      %p271 = scmp.eq.s32.totalorder %s32, 1
      %p272 = por %p270, %p271
      %p274 = scmp.ne.s32.totalorder %s259, %s273
      %p275 = scmp.eq.s32.totalorder %s32, 0
      %p276 = por %p274, %p275
      %s278 = sadd.s32 %s277, 1
      %p281 = scmp.eq.s32.totalorder %s26, 1
      %p282 = scmp.ne.s32.totalorder %s277, %s279
      %p283 = scmp.eq.s32.totalorder %s26, 0
      %p284 = por %p282, %p283
      %p285 = scmp.ne.s32.totalorder %s277, %s279
      %p286 = scmp.eq.s32.totalorder %s31, 1
      %p287 = por %p285, %p286
      %p288 = scmp.ne.s32.totalorder %s279, %s280
      %p289 = scmp.eq.s32.totalorder %s31, 0
      %p290 = por %p288, %p289
      %p291 = scmp.ne.s32.totalorder %s279, %s280
      %p292 = scmp.eq.s32.totalorder %s32, 1
      %p293 = por %p291, %p292
      %p295 = scmp.ne.s32.totalorder %s280, %s294
      %p296 = scmp.eq.s32.totalorder %s32, 0
      %p297 = por %p295, %p296
      %s299 = sadd.s32 %s298, 1
      %p302 = scmp.eq.s32.totalorder %s26, 1
      %p303 = scmp.ne.s32.totalorder %s298, %s300
      %p304 = scmp.eq.s32.totalorder %s26, 0
      %p305 = por %p303, %p304
      %p306 = scmp.ne.s32.totalorder %s298, %s300
      %p307 = scmp.eq.s32.totalorder %s31, 1
      %p308 = por %p306, %p307
      %p309 = scmp.ne.s32.totalorder %s300, %s301
      %p310 = scmp.eq.s32.totalorder %s31, 0
      %p311 = por %p309, %p310
      %p312 = scmp.ne.s32.totalorder %s300, %s301
      %p313 = scmp.eq.s32.totalorder %s32, 1
      %p314 = por %p312, %p313
      %p316 = scmp.ne.s32.totalorder %s301, %s315
      %p317 = scmp.eq.s32.totalorder %s32, 0
      %p318 = por %p316, %p317
      %s320 = sadd.s32 %s319, 1
      %p323 = scmp.eq.s32.totalorder %s26, 1
      %p324 = scmp.ne.s32.totalorder %s319, %s321
      %p325 = scmp.eq.s32.totalorder %s26, 0
      %p326 = por %p324, %p325
      %p327 = scmp.ne.s32.totalorder %s319, %s321
      %p328 = scmp.eq.s32.totalorder %s31, 1
      %p329 = por %p327, %p328
      %p330 = scmp.ne.s32.totalorder %s321, %s322
      %p331 = scmp.eq.s32.totalorder %s31, 0
      %p332 = por %p330, %p331
      %p333 = scmp.ne.s32.totalorder %s321, %s322
      %p334 = scmp.eq.s32.totalorder %s32, 1
      %p335 = por %p333, %p334
      %p337 = scmp.ne.s32.totalorder %s322, %s336
      %p338 = scmp.eq.s32.totalorder %s32, 0
      %p339 = por %p337, %p338
      %s341 = sadd.s32 %s340, 1
      %p344 = scmp.eq.s32.totalorder %s26, 1
      %p345 = scmp.ne.s32.totalorder %s340, %s342
      %p346 = scmp.eq.s32.totalorder %s26, 0
      %p347 = por %p345, %p346
      %p348 = scmp.ne.s32.totalorder %s340, %s342
      %p349 = scmp.eq.s32.totalorder %s31, 1
      %p350 = por %p348, %p349
      %p351 = scmp.ne.s32.totalorder %s342, %s343
      %p352 = scmp.eq.s32.totalorder %s31, 0
      %p353 = por %p351, %p352
      %p354 = scmp.ne.s32.totalorder %s342, %s343
      %p355 = scmp.eq.s32.totalorder %s32, 1
      %p356 = por %p354, %p355
      %p358 = scmp.ne.s32.totalorder %s343, %s357
      %p359 = scmp.eq.s32.totalorder %s32, 0
      %p360 = por %p358, %p359
      %s361 = ssub.s32 %s33, %s45
      %s362 = ssub.s32 %s34, %s41
      %s363 = sor.u32 %s361, %s362
      %p364 = scmp.eq.s32.totalorder %s363, 0
      %s366 = sadd.s32 %s365, 1
      %s367 = scalar_select %p364, %s365, %s366
      %p370 = pneg %p364
      %p371 = scmp.eq.s32.totalorder %s26, 1
      %p372 = por %p370, %p371
      %p373 = scmp.ne.s32.totalorder %s365, %s368
      %p374 = scmp.eq.s32.totalorder %s26, 0
      %p375 = por %p373, %p374
      %p376 = scmp.ne.s32.totalorder %s365, %s368
      %p377 = scmp.eq.s32.totalorder %s31, 1
      %p378 = por %p376, %p377
      %p379 = scmp.ne.s32.totalorder %s368, %s369
      %p380 = scmp.eq.s32.totalorder %s31, 0
      %p381 = por %p379, %p380
      %p382 = scmp.ne.s32.totalorder %s368, %s369
      %p383 = scmp.eq.s32.totalorder %s32, 1
      %p384 = por %p382, %p383
      %p386 = scmp.ne.s32.totalorder %s369, %s385
      %p387 = scmp.eq.s32.totalorder %s32, 0
      %p388 = por %p386, %p387
      %s389 = ssub.s32 %s33, %s45
      %s390 = ssub.s32 %s34, %s41
      %s391 = sor.u32 %s389, %s390
      %p392 = scmp.eq.s32.totalorder %s391, 0
      %s394 = sadd.s32 %s393, 1
      %s395 = scalar_select %p392, %s393, %s394
      %p398 = pneg %p392
      %p399 = scmp.eq.s32.totalorder %s26, 1
      %p400 = por %p398, %p399
      %p401 = scmp.ne.s32.totalorder %s393, %s396
      %p402 = scmp.eq.s32.totalorder %s26, 0
      %p403 = por %p401, %p402
      %p404 = scmp.ne.s32.totalorder %s393, %s396
      %p405 = scmp.eq.s32.totalorder %s31, 1
      %p406 = por %p404, %p405
      %p407 = scmp.ne.s32.totalorder %s396, %s397
      %p408 = scmp.eq.s32.totalorder %s31, 0
      %p409 = por %p407, %p408
      %p410 = scmp.ne.s32.totalorder %s396, %s397
      %p411 = scmp.eq.s32.totalorder %s32, 1
      %p412 = por %p410, %p411
      %p414 = scmp.ne.s32.totalorder %s397, %s413
      %p415 = scmp.eq.s32.totalorder %s32, 0
      %p416 = por %p414, %p415
      %s418 = sadd.s32 %s417, 1
      %p421 = scmp.eq.s32.totalorder %s26, 1
      %p422 = scmp.ne.s32.totalorder %s417, %s419
      %p423 = scmp.eq.s32.totalorder %s26, 0
      %p424 = por %p422, %p423
      %p425 = scmp.ne.s32.totalorder %s417, %s419
      %p426 = scmp.eq.s32.totalorder %s31, 1
      %p427 = por %p425, %p426
      %p428 = scmp.ne.s32.totalorder %s419, %s420
      %p429 = scmp.eq.s32.totalorder %s31, 0
      %p430 = por %p428, %p429
      %p431 = scmp.ne.s32.totalorder %s419, %s420
      %p432 = scmp.eq.s32.totalorder %s32, 1
      %p433 = por %p431, %p432
      %p435 = scmp.ne.s32.totalorder %s420, %s434
      %p436 = scmp.eq.s32.totalorder %s32, 0
      %p437 = por %p435, %p436
      %p438 = scmp.le.s32.totalorder 1, %s26
      %p439 = scmp.lt.s32.totalorder %s26, 3
      %p440 = pnand %p438, %p439
      %p441 = pneg %p440
      // Predicated region
      $region9: #{diffu_completion_forward.21} parent=5 // pred_check
        _
      $region10: #{diffu_completion_forward.21} parent=5 // pred_check_branch
        %443 = sbr.rel (%p440) target = $region12
      $region11: #{diffu_completion_forward.21} parent=5 // pred_region
        %s444 = ssub.s32 %s26, 1
        // Predicated region
        $region13: #{diffu_completion_forward.21} parent=11 // pred_check
          %p445 = pneg %p59
        $region14: #{diffu_completion_forward.21} parent=11 // pred_check_branch
          %447 = sbr.rel (%p445) target = $region16
        $region15: #{diffu_completion_forward.21} parent=11 // pred_region
          %s449 = ssub.s32 16, 16
          %450 = vsyncadd [#allocation5], %s449
          %s452 = sshll.u32 %s0, 4
          %s453 = int_to_ptr.vmem [resolvable:$true] %s452
          %455 = dma.vmem_to_smem %s453, 16, [#allocation3], [#allocation5]
        $region16: #{diffu_completion_forward.21} parent=11 // pred_fallthru
          _
        // Predicated region
        $region17: #{diffu_completion_forward.21} parent=11 // pred_check
          %p456 = pneg %p80
        $region18: #{diffu_completion_forward.21} parent=11 // pred_check_branch
          %458 = sbr.rel (%p456) target = $region20
        $region19: #{diffu_completion_forward.21} parent=11 // pred_region
          %s460 = ssub.s32 16, 16
          %461 = vsyncadd [#allocation7], %s460
          %s463 = sshll.u32 %s1, 4
          %s464 = int_to_ptr.vmem [resolvable:$true] %s463
          %466 = dma.vmem_to_smem %s464, 16, [#allocation6], [#allocation7]
        $region20: #{diffu_completion_forward.21} parent=11 // pred_fallthru
          _
        // Predicated region
        $region21: #{diffu_completion_forward.21} parent=11 // pred_check
          %p467 = pneg %p101
        $region22: #{diffu_completion_forward.21} parent=11 // pred_check_branch
          %469 = sbr.rel (%p467) target = $region24
        $region23: #{diffu_completion_forward.21} parent=11 // pred_region
          _
        $region24: #{diffu_completion_forward.21} parent=11 // pred_fallthru
          _
        // Predicated region
        $region25: #{diffu_completion_forward.21} parent=11 // pred_check
          %p470 = pneg %p122
        $region26: #{diffu_completion_forward.21} parent=11 // pred_check_branch
          %472 = sbr.rel (%p470) target = $region28
        $region27: #{diffu_completion_forward.21} parent=11 // pred_region
          _
        $region28: #{diffu_completion_forward.21} parent=11 // pred_fallthru
          _
        // Predicated region
        $region29: #{diffu_completion_forward.21} parent=11 // pred_check
          %p473 = pneg %p143
        $region30: #{diffu_completion_forward.21} parent=11 // pred_check_branch
          %475 = sbr.rel (%p473) target = $region32
        $region31: #{diffu_completion_forward.21} parent=11 // pred_region
          _
        $region32: #{diffu_completion_forward.21} parent=11 // pred_fallthru
          _
        // Predicated region
        $region33: #{diffu_completion_forward.21} parent=11 // pred_check
          %p476 = pneg %p164
        $region34: #{diffu_completion_forward.21} parent=11 // pred_check_branch
          %478 = sbr.rel (%p476) target = $region36
        $region35: #{diffu_completion_forward.21} parent=11 // pred_region
          _
        $region36: #{diffu_completion_forward.21} parent=11 // pred_fallthru
          _
        // Predicated region
        $region37: #{diffu_completion_forward.21} parent=11 // pred_check
          %p479 = pneg %p185
        $region38: #{diffu_completion_forward.21} parent=11 // pred_check_branch
          %481 = sbr.rel (%p479) target = $region40
        $region39: #{diffu_completion_forward.21} parent=11 // pred_region
          _
        $region40: #{diffu_completion_forward.21} parent=11 // pred_fallthru
          _
        // Predicated region
        $region41: #{diffu_completion_forward.21} parent=11 // pred_check
          %p482 = pneg %p206
        $region42: #{diffu_completion_forward.21} parent=11 // pred_check_branch
          %484 = sbr.rel (%p482) target = $region44
        $region43: #{diffu_completion_forward.21} parent=11 // pred_region
          _
        $region44: #{diffu_completion_forward.21} parent=11 // pred_fallthru
          _
        // Predicated region
        $region45: #{diffu_completion_forward.21} parent=11 // pred_check
          %p485 = pneg %p227
        $region46: #{diffu_completion_forward.21} parent=11 // pred_check_branch
          %487 = sbr.rel (%p485) target = $region48
        $region47: #{diffu_completion_forward.21} parent=11 // pred_region
          _
        $region48: #{diffu_completion_forward.21} parent=11 // pred_fallthru
          _
        // Predicated region
        $region49: #{diffu_completion_forward.21} parent=11 // pred_check
          %p488 = pneg %p248
        $region50: #{diffu_completion_forward.21} parent=11 // pred_check_branch
          %490 = sbr.rel (%p488) target = $region52
        $region51: #{diffu_completion_forward.21} parent=11 // pred_region
          _
        $region52: #{diffu_completion_forward.21} parent=11 // pred_fallthru
          _
        // Predicated region
        $region53: #{diffu_completion_forward.21} parent=11 // pred_check
          %p491 = pneg %p269
        $region54: #{diffu_completion_forward.21} parent=11 // pred_check_branch
          %493 = sbr.rel (%p491) target = $region56
        $region55: #{diffu_completion_forward.21} parent=11 // pred_region
          _
        $region56: #{diffu_completion_forward.21} parent=11 // pred_fallthru
          _
        // Predicated region
        $region57: #{diffu_completion_forward.21} parent=11 // pred_check
          %p494 = pneg %p290
        $region58: #{diffu_completion_forward.21} parent=11 // pred_check_branch
          %496 = sbr.rel (%p494) target = $region60
        $region59: #{diffu_completion_forward.21} parent=11 // pred_region
          _
        $region60: #{diffu_completion_forward.21} parent=11 // pred_fallthru
          _
        // Predicated region
        $region61: #{diffu_completion_forward.21} parent=11 // pred_check
          %p497 = pneg %p311
        $region62: #{diffu_completion_forward.21} parent=11 // pred_check_branch
          %499 = sbr.rel (%p497) target = $region64
        $region63: #{diffu_completion_forward.21} parent=11 // pred_region
          _
        $region64: #{diffu_completion_forward.21} parent=11 // pred_fallthru
          _
        // Predicated region
        $region65: #{diffu_completion_forward.21} parent=11 // pred_check
          %p500 = pneg %p332
        $region66: #{diffu_completion_forward.21} parent=11 // pred_check_branch
          %502 = sbr.rel (%p500) target = $region68
        $region67: #{diffu_completion_forward.21} parent=11 // pred_region
          _
        $region68: #{diffu_completion_forward.21} parent=11 // pred_fallthru
          _
        // Predicated region
        $region69: #{diffu_completion_forward.21} parent=11 // pred_check
          %p503 = pneg %p353
        $region70: #{diffu_completion_forward.21} parent=11 // pred_check_branch
          %505 = sbr.rel (%p503) target = $region72
        $region71: #{diffu_completion_forward.21} parent=11 // pred_region
          _
        $region72: #{diffu_completion_forward.21} parent=11 // pred_fallthru
          _
      $region12: #{diffu_completion_forward.21} parent=5 // pred_fallthru
        _
      %p506 = scmp.lt.s32.totalorder %s26, 2
      // Predicated region
      $region73: #{diffu_completion_forward.21} parent=5 // pred_check
        %p507 = pneg %p506
      $region74: #{diffu_completion_forward.21} parent=5 // pred_check_branch
        %509 = sbr.rel (%p507) target = $region76
      $region75: #{diffu_completion_forward.21} parent=5 // pred_region
        // Predicated region
        $region77: #{diffu_completion_forward.21} parent=75 // pred_check
          %p510 = pneg %p375
        $region78: #{diffu_completion_forward.21} parent=75 // pred_check_branch
          %512 = sbr.rel (%p510) target = $region80
        $region79: #{diffu_completion_forward.21} parent=75 // pred_region
          %s513 = smul.u32 16, %s34
          %p514 = scmp.lt.s32.totalorder %s33, 1
          %s515 = scalar_select %p514, %s33, 1
          %p516 = scmp.lt.s32.totalorder %s513, 15
          %s517 = scalar_select %p516, %s513, 15
          %s518 = smul.addr %s515, 16
          %s519 = sadd.s32 %s517, %s518
          %s520 = smul.addr %s519, 8
          %s521 = scalar_lea.vmem %s15, %s520
          %s522 = smul.u32 16, %s34
        $region80: #{diffu_completion_forward.21} parent=75 // pred_fallthru
          _
        // Predicated region
        $region81: #{diffu_completion_forward.21} parent=75 // pred_check
          %p523 = pneg %p403
        $region82: #{diffu_completion_forward.21} parent=75 // pred_check_branch
          %525 = sbr.rel (%p523) target = $region84
        $region83: #{diffu_completion_forward.21} parent=75 // pred_region
          %s526 = smul.u32 16, %s34
          %p527 = scmp.lt.s32.totalorder %s33, 1
          %s528 = scalar_select %p527, %s33, 1
          %p529 = scmp.lt.s32.totalorder %s526, 15
          %s530 = scalar_select %p529, %s526, 15
          %s531 = smul.addr %s528, 16
          %s532 = sadd.s32 %s530, %s531
          %s533 = smul.addr %s532, 8
          %s534 = scalar_lea.vmem %s16, %s533
          %s535 = smul.u32 16, %s34
        $region84: #{diffu_completion_forward.21} parent=75 // pred_fallthru
          _
      $region76: #{diffu_completion_forward.21} parent=5 // pred_fallthru
        _
      %p536 = scmp.le.s32.totalorder 1, %s26
      %p537 = scmp.lt.s32.totalorder %s26, 3
      %p538 = pnand %p536, %p537
      %p539 = pneg %p538
      // Predicated region
      $region85: #{diffu_completion_forward.21} parent=5 // pred_check
        _
      $region86: #{diffu_completion_forward.21} parent=5 // pred_check_branch
        %541 = sbr.rel (%p538) target = $region88
      $region87: #{diffu_completion_forward.21} parent=5 // pred_region
        %s542 = ssub.s32 %s26, 1
        // Predicated region
        $region89: #{diffu_completion_forward.21} parent=87 // pred_check
          %p543 = pneg %p59
        $region90: #{diffu_completion_forward.21} parent=87 // pred_check_branch
          %545 = sbr.rel (%p543) target = $region92
        $region91: #{diffu_completion_forward.21} parent=87 // pred_region
          %546 = dma.done [#allocation5], 16
        $region92: #{diffu_completion_forward.21} parent=87 // pred_fallthru
          _
        // Predicated region
        $region93: #{diffu_completion_forward.21} parent=87 // pred_check
          %p547 = pneg %p80
        $region94: #{diffu_completion_forward.21} parent=87 // pred_check_branch
          %549 = sbr.rel (%p547) target = $region96
        $region95: #{diffu_completion_forward.21} parent=87 // pred_region
          %550 = dma.done [#allocation7], 16
        $region96: #{diffu_completion_forward.21} parent=87 // pred_fallthru
          _
        %551 = sfence
        %p552 = pneg %p59
        %p553 = pneg %p56
        %p554 = pneg %p80
        %p555 = pneg %p77
        %p556 = pneg %p101
        %p557 = pneg %p98
        %p558 = pneg %p122
        %p559 = pneg %p119
        %p560 = pneg %p143
        %p561 = pneg %p140
        %p562 = pneg %p164
        %p563 = pneg %p161
        %p564 = pneg %p185
        %p565 = pneg %p182
        %p566 = pneg %p206
        %p567 = pneg %p203
        %p568 = pneg %p227
        %p569 = pneg %p224
        %p570 = pneg %p248
        %p571 = pneg %p245
        %p572 = pneg %p269
        %p573 = pneg %p266
        %p574 = pneg %p290
        %p575 = pneg %p287
        %p576 = pneg %p311
        %p577 = pneg %p308
        %p578 = pneg %p332
        %p579 = pneg %p329
        %p580 = pneg %p353
        %p581 = pneg %p350
        %s582 = smul.u32 16, %s36
        %p583 = scmp.lt.s32.totalorder %s35, 1
        %s584 = scalar_select %p583, %s35, 1
        %p585 = scmp.lt.s32.totalorder %s582, 15
        %s586 = scalar_select %p585, %s582, 15
        %s587 = smul.addr %s584, 16
        %s588 = sadd.s32 %s586, %s587
        %s589 = smul.addr %s588, 8
        %s590 = scalar_lea.vmem %s15, %s589
        %p591 = pneg %p381
        %p592 = pneg %p378
        %s593 = smul.u32 16, %s36
        %p594 = scmp.lt.s32.totalorder %s35, 1
        %s595 = scalar_select %p594, %s35, 1
        %p596 = scmp.lt.s32.totalorder %s593, 15
        %s597 = scalar_select %p596, %s593, 15
        %s598 = smul.addr %s595, 16
        %s599 = sadd.s32 %s597, %s598
        %s600 = smul.addr %s599, 8
        %s601 = scalar_lea.vmem %s16, %s600
        %p602 = pneg %p409
        %p603 = pneg %p406
        %p604 = pneg %p430
        %p605 = pneg %p427
        %s606 = smul.u32 16, %s36
        %p607 = scmp.lt.s32.totalorder %s35, 1
        %s608 = scalar_select %p607, %s35, 1
        %p609 = scmp.lt.s32.totalorder %s606, 15
        %s610 = scalar_select %p609, %s606, 15
        %s611 = smul.addr %s608, 16
        %s612 = sadd.s32 %s610, %s611
        %s613 = smul.addr %s612, 8
        %s614 = scalar_lea.vmem %s15, %s613
        %s615 = smul.u32 16, %s36
        %s616 = smul.u32 16, %s36
        %p617 = scmp.lt.s32.totalorder %s35, 1
        %s618 = scalar_select %p617, %s35, 1
        %p619 = scmp.lt.s32.totalorder %s616, 15
        %s620 = scalar_select %p619, %s616, 15
        %s621 = smul.addr %s618, 16
        %s622 = sadd.s32 %s620, %s621
        %s623 = smul.addr %s622, 8
        %s624 = scalar_lea.vmem %s16, %s623
        %s625 = smul.u32 16, %s36
        %p627 = scmp.eq.s32.totalorder %s35, 0
        %p628 = scmp.eq.s32.totalorder %s36, 0
        %p629 = pnand %p627, %p628
        %p630 = pneg %p629
        // Predicated region
        $region97: #{diffu_completion_forward.21} parent=87 // pred_check
          _
        $region98: #{diffu_completion_forward.21} parent=87 // pred_check_branch
          %632 = sbr.rel (%p629) target = $region100
        $region99: #{diffu_completion_forward.21} parent=87 // pred_region
          %v633 = vld [vmem:[%s2] sm:$0xff]
          %v634 = vld [vmem:[%s2 + $0x8] sm:$0xff]
          %v635 = vld [vmem:[%s2 + $0x10] sm:$0xff]
          %v636 = vld [vmem:[%s2 + $0x18] sm:$0xff]
          %v637 = vld [vmem:[%s2 + $0x20] sm:$0xff]
          %v638 = vld [vmem:[%s2 + $0x28] sm:$0xff]
          %v639 = vld [vmem:[%s2 + $0x30] sm:$0xff]
          %v640 = vld [vmem:[%s2 + $0x38] sm:$0xff]
          %v641 = vld [vmem:[%s2 + $0x40] sm:$0xff]
          %v642 = vld [vmem:[%s2 + $0x48] sm:$0xff]
          %v643 = vld [vmem:[%s2 + $0x50] sm:$0xff]
          %v644 = vld [vmem:[%s2 + $0x58] sm:$0xff]
          %v645 = vld [vmem:[%s2 + $0x60] sm:$0xff]
          %v646 = vld [vmem:[%s2 + $0x68] sm:$0xff]
          %v647 = vld [vmem:[%s2 + $0x70] sm:$0xff]
          %v648 = vld [vmem:[%s2 + $0x78] sm:$0xff]
          %v649 = vld [vmem:[%s2 + $0x80] sm:$0xff]
          %v650 = vld [vmem:[%s2 + $0x88] sm:$0xff]
          %v651 = vld [vmem:[%s2 + $0x90] sm:$0xff]
          %v652 = vld [vmem:[%s2 + $0x98] sm:$0xff]
          %v653 = vld [vmem:[%s2 + $0xa0] sm:$0xff]
          %v654 = vld [vmem:[%s2 + $0xa8] sm:$0xff]
          %v655 = vld [vmem:[%s2 + $0xb0] sm:$0xff]
          %v656 = vld [vmem:[%s2 + $0xb8] sm:$0xff]
          %v657 = vld [vmem:[%s2 + $0xc0] sm:$0xff]
          %v658 = vld [vmem:[%s2 + $0xc8] sm:$0xff]
          %v659 = vld [vmem:[%s2 + $0xd0] sm:$0xff]
          %v660 = vld [vmem:[%s2 + $0xd8] sm:$0xff]
          %v661 = vld [vmem:[%s2 + $0xe0] sm:$0xff]
          %v662 = vld [vmem:[%s2 + $0xe8] sm:$0xff]
          %v663 = vld [vmem:[%s2 + $0xf0] sm:$0xff]
          %v664 = vld [vmem:[%s2 + $0xf8] sm:$0xff]
          %v665 = vpack.c.bf16 %v634, %v633
          %v666 = vpack.c.bf16 %v636, %v635
          %v667 = vpack.c.bf16 %v638, %v637
          %v668 = vpack.c.bf16 %v640, %v639
          %v669 = vpack.c.bf16 %v642, %v641
          %v670 = vpack.c.bf16 %v644, %v643
          %v671 = vpack.c.bf16 %v646, %v645
          %v672 = vpack.c.bf16 %v648, %v647
          %v673 = vpack.c.bf16 %v650, %v649
          %v674 = vpack.c.bf16 %v652, %v651
          %v675 = vpack.c.bf16 %v654, %v653
          %v676 = vpack.c.bf16 %v656, %v655
          %v677 = vpack.c.bf16 %v658, %v657
          %v678 = vpack.c.bf16 %v660, %v659
          %v679 = vpack.c.bf16 %v662, %v661
          %v680 = vpack.c.bf16 %v664, %v663
          %v681 = vld [vmem:[%s4] sm:$0x3]
          %v682 = vld [vmem:[%s5] sm:$0x1]
          %v684 = vlaneseq
          %v685 = vshrl.u32 %v684, 7
          %v686 = vsub.s32 0, %v685
          %v687 = vrot.slane %v682, %v686
          %vm689 = vcmask 23552
          %v691 = vsel %vm689, %v665, 0
          %v694 = vsel %vm689, %v666, 0
          %v697 = vsel %vm689, %v667, 0
          %v700 = vsel %vm689, %v668, 0
          %v703 = vsel %vm689, %v669, 0
          %v706 = vsel %vm689, %v670, 0
          %v709 = vsel %vm689, %v671, 0
          %v712 = vsel %vm689, %v672, 0
          %v715 = vsel %vm689, %v673, 0
          %v718 = vsel %vm689, %v674, 0
          %v721 = vsel %vm689, %v675, 0
          %v724 = vsel %vm689, %v676, 0
          %v727 = vsel %vm689, %v677, 0
          %v730 = vsel %vm689, %v678, 0
          %v733 = vsel %vm689, %v679, 0
          %v736 = vsel %vm689, %v680, 0
          %vm738 = vcmask 1040384
          %vm739 = vcmask 1041408
          %v740 = vsel %vm738, 4294967295, 65535
          %v741 = vsel %vm739, %v740, 0
          %v743 = vand.u32 %v681, %v741
          %745 = vmatprep.subr.bf16.mxu0 0
          %746 = vmatpush1.bf16.msra.mxu0 0
          %747 = vmatprep.subr.bf16.mxu0 0
          %748 = vmatpush1.bf16.msra.mxu0 0
          %749 = vmatprep.subr.bf16.mxu0 0
          %750 = vmatpush1.bf16.msra.mxu0 0
          %751 = vmatprep.subr.bf16.mxu0 0
          %752 = vmatpush1.bf16.msra.mxu0 0
          %753 = vmatprep.subr.bf16.mxu0 0
          %754 = vmatpush1.bf16.msra.mxu0 0
          %755 = vmatprep.subr.bf16.mxu0 0
          %756 = vmatpush1.bf16.msra.mxu0 0
          %757 = vmatprep.subr.bf16.mxu0 0
          %758 = vmatpush1.bf16.msra.mxu0 0
          %759 = vmatprep.subr.bf16.mxu0 0
          %760 = vmatpush1.bf16.msra.mxu0 %v743
          %761 = vmatprep.subr.bf16.mxu0 0
          %762 = vmatpush2.bf16.msra.mxu0 0
          %763 = vmatprep.subr.bf16.mxu0 0
          %764 = vmatpush2.bf16.msra.mxu0 0
          %765 = vmatprep.subr.bf16.mxu0 0
          %766 = vmatpush2.bf16.msra.mxu0 0
          %767 = vmatprep.subr.bf16.mxu0 0
          %768 = vmatpush2.bf16.msra.mxu0 0
          %769 = vmatprep.subr.bf16.mxu0 0
          %770 = vmatpush2.bf16.msra.mxu0 0
          %771 = vmatprep.subr.bf16.mxu0 0
          %772 = vmatpush2.bf16.msra.mxu0 0
          %773 = vmatprep.subr.bf16.mxu0 0
          %774 = vmatpush2.bf16.msra.mxu0 0
          %775 = vmatprep.subr.bf16.mxu0 0
          %776 = vmatpush2.bf16.msra.mxu0 0
          %777 = vmatprep.mubr.bf16.mxu0 0
          %778 = vmatmul.mubr.bf16.gmra.mxu0 %v691
          %v779 = vpop.f32.mrf.mxu0
          %v780 = vadd.f32 %v687, %v779
          %v781 = vpop.f32.mrf.mxu0
          %v782 = vpop.f32.mrf.mxu0
          %v783 = vadd.f32 %v687, %v782
          %v784 = vpop.f32.mrf.mxu0
          %785 = vmatprep.mubr.bf16.mxu0 0
          %786 = vmatmul.mubr.bf16.gmra.mxu0 %v694
          %v787 = vpop.f32.mrf.mxu0
          %v788 = vadd.f32 %v687, %v787
          %v789 = vpop.f32.mrf.mxu0
          %v790 = vpop.f32.mrf.mxu0
          %v791 = vadd.f32 %v687, %v790
          %v792 = vpop.f32.mrf.mxu0
          %793 = vmatprep.mubr.bf16.mxu0 0
          %794 = vmatmul.mubr.bf16.gmra.mxu0 %v697
          %v795 = vpop.f32.mrf.mxu0
          %v796 = vadd.f32 %v687, %v795
          %v797 = vpop.f32.mrf.mxu0
          %v798 = vpop.f32.mrf.mxu0
          %v799 = vadd.f32 %v687, %v798
          %v800 = vpop.f32.mrf.mxu0
          %801 = vmatprep.mubr.bf16.mxu0 0
          %802 = vmatmul.mubr.bf16.gmra.mxu0 %v700
          %v803 = vpop.f32.mrf.mxu0
          %v804 = vadd.f32 %v687, %v803
          %v805 = vpop.f32.mrf.mxu0
          %v806 = vpop.f32.mrf.mxu0
          %v807 = vadd.f32 %v687, %v806
          %v808 = vpop.f32.mrf.mxu0
          %809 = vmatprep.mubr.bf16.mxu0 0
          %810 = vmatmul.mubr.bf16.gmra.mxu0 %v703
          %v811 = vpop.f32.mrf.mxu0
          %v812 = vadd.f32 %v687, %v811
          %v813 = vpop.f32.mrf.mxu0
          %v814 = vpop.f32.mrf.mxu0
          %v815 = vadd.f32 %v687, %v814
          %v816 = vpop.f32.mrf.mxu0
          %817 = vmatprep.mubr.bf16.mxu0 0
          %818 = vmatmul.mubr.bf16.gmra.mxu0 %v706
          %v819 = vpop.f32.mrf.mxu0
          %v820 = vadd.f32 %v687, %v819
          %v821 = vpop.f32.mrf.mxu0
          %v822 = vpop.f32.mrf.mxu0
          %v823 = vadd.f32 %v687, %v822
          %v824 = vpop.f32.mrf.mxu0
          %825 = vmatprep.mubr.bf16.mxu0 0
          %826 = vmatmul.mubr.bf16.gmra.mxu0 %v709
          %v827 = vpop.f32.mrf.mxu0
          %v828 = vadd.f32 %v687, %v827
          %v829 = vpop.f32.mrf.mxu0
          %v830 = vpop.f32.mrf.mxu0
          %v831 = vadd.f32 %v687, %v830
          %v832 = vpop.f32.mrf.mxu0
          %833 = vmatprep.mubr.bf16.mxu0 0
          %834 = vmatmul.mubr.bf16.gmra.mxu0 %v712
          %v835 = vpop.f32.mrf.mxu0
          %v836 = vadd.f32 %v687, %v835
          %v837 = vpop.f32.mrf.mxu0
          %v838 = vpop.f32.mrf.mxu0
          %v839 = vadd.f32 %v687, %v838
          %v840 = vpop.f32.mrf.mxu0
          %841 = vmatprep.mubr.bf16.mxu0 0
          %842 = vmatmul.mubr.bf16.gmra.mxu0 %v715
          %v843 = vpop.f32.mrf.mxu0
          %v844 = vadd.f32 %v687, %v843
          %v845 = vpop.f32.mrf.mxu0
          %v846 = vpop.f32.mrf.mxu0
          %v847 = vadd.f32 %v687, %v846
          %v848 = vpop.f32.mrf.mxu0
          %849 = vmatprep.mubr.bf16.mxu0 0
          %850 = vmatmul.mubr.bf16.gmra.mxu0 %v718
          %v851 = vpop.f32.mrf.mxu0
          %v852 = vadd.f32 %v687, %v851
          %v853 = vpop.f32.mrf.mxu0
          %v854 = vpop.f32.mrf.mxu0
          %v855 = vadd.f32 %v687, %v854
          %v856 = vpop.f32.mrf.mxu0
          %857 = vmatprep.mubr.bf16.mxu0 0
          %858 = vmatmul.mubr.bf16.gmra.mxu0 %v721
          %v859 = vpop.f32.mrf.mxu0
          %v860 = vadd.f32 %v687, %v859
          %v861 = vpop.f32.mrf.mxu0
          %v862 = vpop.f32.mrf.mxu0
          %v863 = vadd.f32 %v687, %v862
          %v864 = vpop.f32.mrf.mxu0
          %865 = vmatprep.mubr.bf16.mxu0 0
          %866 = vmatmul.mubr.bf16.gmra.mxu0 %v724
          %v867 = vpop.f32.mrf.mxu0
          %v868 = vadd.f32 %v687, %v867
          %v869 = vpop.f32.mrf.mxu0
          %v870 = vpop.f32.mrf.mxu0
          %v871 = vadd.f32 %v687, %v870
          %v872 = vpop.f32.mrf.mxu0
          %873 = vmatprep.mubr.bf16.mxu0 0
          %874 = vmatmul.mubr.bf16.gmra.mxu0 %v727
          %v875 = vpop.f32.mrf.mxu0
          %v876 = vadd.f32 %v687, %v875
          %v877 = vpop.f32.mrf.mxu0
          %v878 = vpop.f32.mrf.mxu0
          %v879 = vadd.f32 %v687, %v878
          %v880 = vpop.f32.mrf.mxu0
          %881 = vmatprep.mubr.bf16.mxu0 0
          %882 = vmatmul.mubr.bf16.gmra.mxu0 %v730
          %v883 = vpop.f32.mrf.mxu0
          %v884 = vadd.f32 %v687, %v883
          %v885 = vpop.f32.mrf.mxu0
          %v886 = vpop.f32.mrf.mxu0
          %v887 = vadd.f32 %v687, %v886
          %v888 = vpop.f32.mrf.mxu0
          %889 = vmatprep.mubr.bf16.mxu0 0
          %890 = vmatmul.mubr.bf16.gmra.mxu0 %v733
          %v891 = vpop.f32.mrf.mxu0
          %v892 = vadd.f32 %v687, %v891
          %v893 = vpop.f32.mrf.mxu0
          %v894 = vpop.f32.mrf.mxu0
          %v895 = vadd.f32 %v687, %v894
          %v896 = vpop.f32.mrf.mxu0
          %897 = vmatprep.mubr.bf16.mxu0 0
          %898 = vmatmul.mubr.bf16.gmra.mxu0 %v736
          %v899 = vpop.f32.mrf.mxu0
          %v900 = vadd.f32 %v687, %v899
          %v901 = vpop.f32.mrf.mxu0
          %v902 = vpop.f32.mrf.mxu0
          %v903 = vadd.f32 %v687, %v902
          %v904 = vpop.f32.mrf.mxu0
          %905 = vdwg.mxu0
          %v906 = vmax.f32 %v780, 0.0
          %v907 = vmax.f32 %v783, 0.0
          %v908 = vmax.f32 %v788, 0.0
          %v909 = vmax.f32 %v791, 0.0
          %v910 = vmax.f32 %v796, 0.0
          %v911 = vmax.f32 %v799, 0.0
          %v912 = vmax.f32 %v804, 0.0
          %v913 = vmax.f32 %v807, 0.0
          %v914 = vmax.f32 %v812, 0.0
          %v915 = vmax.f32 %v815, 0.0
          %v916 = vmax.f32 %v820, 0.0
          %v917 = vmax.f32 %v823, 0.0
          %v918 = vmax.f32 %v828, 0.0
          %v919 = vmax.f32 %v831, 0.0
          %v920 = vmax.f32 %v836, 0.0
          %v921 = vmax.f32 %v839, 0.0
          %v922 = vmax.f32 %v844, 0.0
          %v923 = vmax.f32 %v847, 0.0
          %v924 = vmax.f32 %v852, 0.0
          %v925 = vmax.f32 %v855, 0.0
          %v926 = vmax.f32 %v860, 0.0
          %v927 = vmax.f32 %v863, 0.0
          %v928 = vmax.f32 %v868, 0.0
          %v929 = vmax.f32 %v871, 0.0
          %v930 = vmax.f32 %v876, 0.0
          %v931 = vmax.f32 %v879, 0.0
          %v932 = vmax.f32 %v884, 0.0
          %v933 = vmax.f32 %v887, 0.0
          %v934 = vmax.f32 %v892, 0.0
          %v935 = vmax.f32 %v895, 0.0
          %v936 = vmax.f32 %v900, 0.0
          %v937 = vmax.f32 %v903, 0.0
          %v938 = vpack.c.bf16 %v907, %v906
          %v939 = vpack.c.bf16 %v909, %v908
          %v940 = vpack.c.bf16 %v911, %v910
          %v941 = vpack.c.bf16 %v913, %v912
          %v942 = vpack.c.bf16 %v915, %v914
          %v943 = vpack.c.bf16 %v917, %v916
          %v944 = vpack.c.bf16 %v919, %v918
          %v945 = vpack.c.bf16 %v921, %v920
          %v946 = vpack.c.bf16 %v923, %v922
          %v947 = vpack.c.bf16 %v925, %v924
          %v948 = vpack.c.bf16 %v927, %v926
          %v949 = vpack.c.bf16 %v929, %v928
          %v950 = vpack.c.bf16 %v931, %v930
          %v951 = vpack.c.bf16 %v933, %v932
          %v952 = vpack.c.bf16 %v935, %v934
          %v953 = vpack.c.bf16 %v937, %v936
          %v954 = vld [vmem:[%s6] sm:$0xf]
          %v955 = vld [vmem:[%s6 + $0x4] sm:$0xf]
          %v956 = vld [vmem:[%s6 + $0x8] sm:$0xf]
          %v957 = vld [vmem:[%s6 + $0xc] sm:$0xf]
          %v958 = vld [vmem:[%s6 + $0x10] sm:$0xf]
          %v959 = vld [vmem:[%s6 + $0x14] sm:$0xf]
          %v960 = vld [vmem:[%s6 + $0x18] sm:$0xf]
          %v961 = vld [vmem:[%s6 + $0x1c] sm:$0xf]
          %v962 = vld [vmem:[%s14] sm:$0x1]
          %v963 = vlaneseq
          %v964 = vshrl.u32 %v963, 7
          %v965 = vsub.s32 0, %v964
          %v966 = vrot.slane %v962, %v965
          %v975 = vunpack.c.l.b16 %v954
          %v976 = vunpack.c.l.b16 %v955
          %v977 = vunpack.c.l.b16 %v956
          %v978 = vunpack.c.l.b16 %v957
          %v979 = vunpack.c.l.b16 %v958
          %v980 = vunpack.c.l.b16 %v959
          %v981 = vunpack.c.l.b16 %v960
          %v982 = vunpack.c.l.b16 %v961
          %v983 = vpack.c.b16 %v976, %v975
          %v984 = vpack.c.b16 %v978, %v977
          %v985 = vpack.c.b16 %v980, %v979
          %v986 = vpack.c.b16 %v982, %v981
          %vm991 = vcmask 523264
          %v993 = vsel %vm991, %v938, 0
          %v996 = vsel %vm991, %v939, 0
          %v999 = vsel %vm991, %v940, 0
          %v1002 = vsel %vm991, %v941, 0
          %v1005 = vsel %vm991, %v942, 0
          %v1008 = vsel %vm991, %v943, 0
          %v1011 = vsel %vm991, %v944, 0
          %v1014 = vsel %vm991, %v945, 0
          %v1017 = vsel %vm991, %v946, 0
          %v1020 = vsel %vm991, %v947, 0
          %v1023 = vsel %vm991, %v948, 0
          %v1026 = vsel %vm991, %v949, 0
          %v1029 = vsel %vm991, %v950, 0
          %v1032 = vsel %vm991, %v951, 0
          %v1035 = vsel %vm991, %v952, 0
          %v1038 = vsel %vm991, %v953, 0
          %1040 = vmatprep.subr.bf16.mxu0 0
          %1041 = vmatpush1.bf16.msra.mxu0 0
          %1042 = vmatprep.subr.bf16.mxu0 0
          %1043 = vmatpush1.bf16.msra.mxu0 0
          %1044 = vmatprep.subr.bf16.mxu0 0
          %1045 = vmatpush1.bf16.msra.mxu0 0
          %1046 = vmatprep.subr.bf16.mxu0 0
          %1047 = vmatpush1.bf16.msra.mxu0 0
          %1048 = vmatprep.subr.bf16.mxu0 0
          %1049 = vmatpush1.bf16.msra.mxu0 %v986
          %1050 = vmatprep.subr.bf16.mxu0 0
          %1051 = vmatpush1.bf16.msra.mxu0 %v985
          %1052 = vmatprep.subr.bf16.mxu0 0
          %1053 = vmatpush1.bf16.msra.mxu0 %v984
          %1054 = vmatprep.subr.bf16.mxu0 0
          %1055 = vmatpush1.bf16.msra.mxu0 %v983
          %1056 = vmatprep.subr.bf16.mxu0 0
          %1057 = vmatpush2.bf16.msra.mxu0 0
          %1058 = vmatprep.subr.bf16.mxu0 0
          %1059 = vmatpush2.bf16.msra.mxu0 0
          %1060 = vmatprep.subr.bf16.mxu0 0
          %1061 = vmatpush2.bf16.msra.mxu0 0
          %1062 = vmatprep.subr.bf16.mxu0 0
          %1063 = vmatpush2.bf16.msra.mxu0 0
          %1064 = vmatprep.subr.bf16.mxu0 0
          %1065 = vmatpush2.bf16.msra.mxu0 0
          %1066 = vmatprep.subr.bf16.mxu0 0
          %1067 = vmatpush2.bf16.msra.mxu0 0
          %1068 = vmatprep.subr.bf16.mxu0 0
          %1069 = vmatpush2.bf16.msra.mxu0 0
          %1070 = vmatprep.subr.bf16.mxu0 0
          %1071 = vmatpush2.bf16.msra.mxu0 0
          %1072 = vmatprep.mubr.bf16.mxu0 0
          %1073 = vmatmul.mubr.bf16.gmra.mxu0 %v993
          %v1074 = vpop.f32.mrf.mxu0
          %v1075 = vadd.f32 %v966, %v1074
          %v1076 = vpop.f32.mrf.mxu0
          %v1077 = vpop.f32.mrf.mxu0
          %v1078 = vadd.f32 %v966, %v1077
          %v1079 = vpop.f32.mrf.mxu0
          %1080 = vmatprep.mubr.bf16.mxu0 0
          %1081 = vmatmul.mubr.bf16.gmra.mxu0 %v996
          %v1082 = vpop.f32.mrf.mxu0
          %v1083 = vadd.f32 %v966, %v1082
          %v1084 = vpop.f32.mrf.mxu0
          %v1085 = vpop.f32.mrf.mxu0
          %v1086 = vadd.f32 %v966, %v1085
          %v1087 = vpop.f32.mrf.mxu0
          %1088 = vmatprep.mubr.bf16.mxu0 0
          %1089 = vmatmul.mubr.bf16.gmra.mxu0 %v999
          %v1090 = vpop.f32.mrf.mxu0
          %v1091 = vadd.f32 %v966, %v1090
          %v1092 = vpop.f32.mrf.mxu0
          %v1093 = vpop.f32.mrf.mxu0
          %v1094 = vadd.f32 %v966, %v1093
          %v1095 = vpop.f32.mrf.mxu0
          %1096 = vmatprep.mubr.bf16.mxu0 0
          %1097 = vmatmul.mubr.bf16.gmra.mxu0 %v1002
          %v1098 = vpop.f32.mrf.mxu0
          %v1099 = vadd.f32 %v966, %v1098
          %v1100 = vpop.f32.mrf.mxu0
          %v1101 = vpop.f32.mrf.mxu0
          %v1102 = vadd.f32 %v966, %v1101
          %v1103 = vpop.f32.mrf.mxu0
          %1104 = vmatprep.mubr.bf16.mxu0 0
          %1105 = vmatmul.mubr.bf16.gmra.mxu0 %v1005
          %v1106 = vpop.f32.mrf.mxu0
          %v1107 = vadd.f32 %v966, %v1106
          %v1108 = vpop.f32.mrf.mxu0
          %v1109 = vpop.f32.mrf.mxu0
          %v1110 = vadd.f32 %v966, %v1109
          %v1111 = vpop.f32.mrf.mxu0
          %1112 = vmatprep.mubr.bf16.mxu0 0
          %1113 = vmatmul.mubr.bf16.gmra.mxu0 %v1008
          %v1114 = vpop.f32.mrf.mxu0
          %v1115 = vadd.f32 %v966, %v1114
          %v1116 = vpop.f32.mrf.mxu0
          %v1117 = vpop.f32.mrf.mxu0
          %v1118 = vadd.f32 %v966, %v1117
          %v1119 = vpop.f32.mrf.mxu0
          %1120 = vmatprep.mubr.bf16.mxu0 0
          %1121 = vmatmul.mubr.bf16.gmra.mxu0 %v1011
          %v1122 = vpop.f32.mrf.mxu0
          %v1123 = vadd.f32 %v966, %v1122
          %v1124 = vpop.f32.mrf.mxu0
          %v1125 = vpop.f32.mrf.mxu0
          %v1126 = vadd.f32 %v966, %v1125
          %v1127 = vpop.f32.mrf.mxu0
          %1128 = vmatprep.mubr.bf16.mxu0 0
          %1129 = vmatmul.mubr.bf16.gmra.mxu0 %v1014
          %v1130 = vpop.f32.mrf.mxu0
          %v1131 = vadd.f32 %v966, %v1130
          %v1132 = vpop.f32.mrf.mxu0
          %v1133 = vpop.f32.mrf.mxu0
          %v1134 = vadd.f32 %v966, %v1133
          %v1135 = vpop.f32.mrf.mxu0
          %1136 = vmatprep.mubr.bf16.mxu0 0
          %1137 = vmatmul.mubr.bf16.gmra.mxu0 %v1017
          %v1138 = vpop.f32.mrf.mxu0
          %v1139 = vadd.f32 %v966, %v1138
          %v1140 = vpop.f32.mrf.mxu0
          %v1141 = vpop.f32.mrf.mxu0
          %v1142 = vadd.f32 %v966, %v1141
          %v1143 = vpop.f32.mrf.mxu0
          %1144 = vmatprep.mubr.bf16.mxu0 0
          %1145 = vmatmul.mubr.bf16.gmra.mxu0 %v1020
          %v1146 = vpop.f32.mrf.mxu0
          %v1147 = vadd.f32 %v966, %v1146
          %v1148 = vpop.f32.mrf.mxu0
          %v1149 = vpop.f32.mrf.mxu0
          %v1150 = vadd.f32 %v966, %v1149
          %v1151 = vpop.f32.mrf.mxu0
          %1152 = vmatprep.mubr.bf16.mxu0 0
          %1153 = vmatmul.mubr.bf16.gmra.mxu0 %v1023
          %v1154 = vpop.f32.mrf.mxu0
          %v1155 = vadd.f32 %v966, %v1154
          %v1156 = vpop.f32.mrf.mxu0
          %v1157 = vpop.f32.mrf.mxu0
          %v1158 = vadd.f32 %v966, %v1157
          %v1159 = vpop.f32.mrf.mxu0
          %1160 = vmatprep.mubr.bf16.mxu0 0
          %1161 = vmatmul.mubr.bf16.gmra.mxu0 %v1026
          %v1162 = vpop.f32.mrf.mxu0
          %v1163 = vadd.f32 %v966, %v1162
          %v1164 = vpop.f32.mrf.mxu0
          %v1165 = vpop.f32.mrf.mxu0
          %v1166 = vadd.f32 %v966, %v1165
          %v1167 = vpop.f32.mrf.mxu0
          %1168 = vmatprep.mubr.bf16.mxu0 0
          %1169 = vmatmul.mubr.bf16.gmra.mxu0 %v1029
          %v1170 = vpop.f32.mrf.mxu0
          %v1171 = vadd.f32 %v966, %v1170
          %v1172 = vpop.f32.mrf.mxu0
          %v1173 = vpop.f32.mrf.mxu0
          %v1174 = vadd.f32 %v966, %v1173
          %v1175 = vpop.f32.mrf.mxu0
          %1176 = vmatprep.mubr.bf16.mxu0 0
          %1177 = vmatmul.mubr.bf16.gmra.mxu0 %v1032
          %v1178 = vpop.f32.mrf.mxu0
          %v1179 = vadd.f32 %v966, %v1178
          %v1180 = vpop.f32.mrf.mxu0
          %v1181 = vpop.f32.mrf.mxu0
          %v1182 = vadd.f32 %v966, %v1181
          %v1183 = vpop.f32.mrf.mxu0
          %1184 = vmatprep.mubr.bf16.mxu0 0
          %1185 = vmatmul.mubr.bf16.gmra.mxu0 %v1035
          %v1186 = vpop.f32.mrf.mxu0
          %v1187 = vadd.f32 %v966, %v1186
          %v1188 = vpop.f32.mrf.mxu0
          %v1189 = vpop.f32.mrf.mxu0
          %v1190 = vadd.f32 %v966, %v1189
          %v1191 = vpop.f32.mrf.mxu0
          %1192 = vmatprep.mubr.bf16.mxu0 0
          %1193 = vmatmul.mubr.bf16.gmra.mxu0 %v1038
          %v1194 = vpop.f32.mrf.mxu0
          %v1195 = vadd.f32 %v966, %v1194
          %v1196 = vpop.f32.mrf.mxu0
          %v1197 = vpop.f32.mrf.mxu0
          %v1198 = vadd.f32 %v966, %v1197
          %v1199 = vpop.f32.mrf.mxu0
          %1200 = vdwg.mxu0
          %v1201 = vmax.f32 %v1075, 0.0
          %v1202 = vmax.f32 %v1078, 0.0
          %v1203 = vmax.f32 %v1083, 0.0
          %v1204 = vmax.f32 %v1086, 0.0
          %v1205 = vmax.f32 %v1091, 0.0
          %v1206 = vmax.f32 %v1094, 0.0
          %v1207 = vmax.f32 %v1099, 0.0
          %v1208 = vmax.f32 %v1102, 0.0
          %v1209 = vmax.f32 %v1107, 0.0
          %v1210 = vmax.f32 %v1110, 0.0
          %v1211 = vmax.f32 %v1115, 0.0
          %v1212 = vmax.f32 %v1118, 0.0
          %v1213 = vmax.f32 %v1123, 0.0
          %v1214 = vmax.f32 %v1126, 0.0
          %v1215 = vmax.f32 %v1131, 0.0
          %v1216 = vmax.f32 %v1134, 0.0
          %v1217 = vmax.f32 %v1139, 0.0
          %v1218 = vmax.f32 %v1142, 0.0
          %v1219 = vmax.f32 %v1147, 0.0
          %v1220 = vmax.f32 %v1150, 0.0
          %v1221 = vmax.f32 %v1155, 0.0
          %v1222 = vmax.f32 %v1158, 0.0
          %v1223 = vmax.f32 %v1163, 0.0
          %v1224 = vmax.f32 %v1166, 0.0
          %v1225 = vmax.f32 %v1171, 0.0
          %v1226 = vmax.f32 %v1174, 0.0
          %v1227 = vmax.f32 %v1179, 0.0
          %v1228 = vmax.f32 %v1182, 0.0
          %v1229 = vmax.f32 %v1187, 0.0
          %v1230 = vmax.f32 %v1190, 0.0
          %v1231 = vmax.f32 %v1195, 0.0
          %v1232 = vmax.f32 %v1198, 0.0
          %v1233 = vpack.c.bf16 %v1202, %v1201
          %v1234 = vpack.c.bf16 %v1204, %v1203
          %v1235 = vpack.c.bf16 %v1206, %v1205
          %v1236 = vpack.c.bf16 %v1208, %v1207
          %v1237 = vpack.c.bf16 %v1210, %v1209
          %v1238 = vpack.c.bf16 %v1212, %v1211
          %v1239 = vpack.c.bf16 %v1214, %v1213
          %v1240 = vpack.c.bf16 %v1216, %v1215
          %v1241 = vpack.c.bf16 %v1218, %v1217
          %v1242 = vpack.c.bf16 %v1220, %v1219
          %v1243 = vpack.c.bf16 %v1222, %v1221
          %v1244 = vpack.c.bf16 %v1224, %v1223
          %v1245 = vpack.c.bf16 %v1226, %v1225
          %v1246 = vpack.c.bf16 %v1228, %v1227
          %v1247 = vpack.c.bf16 %v1230, %v1229
          %v1248 = vpack.c.bf16 %v1232, %v1231
          %v1249 = vld [vmem:[%s7] sm:$0xf]
          %v1250 = vld [vmem:[%s7 + $0x4] sm:$0xf]
          %v1251 = vld [vmem:[%s7 + $0x8] sm:$0xf]
          %v1252 = vld [vmem:[%s7 + $0xc] sm:$0xf]
          %v1253 = vld [vmem:[%s7 + $0x10] sm:$0xf]
          %v1254 = vld [vmem:[%s7 + $0x14] sm:$0xf]
          %v1255 = vld [vmem:[%s7 + $0x18] sm:$0xf]
          %v1256 = vld [vmem:[%s7 + $0x1c] sm:$0xf]
          %v1257 = vld [vmem:[%s7 + $0x20] sm:$0xf]
          %v1258 = vld [vmem:[%s7 + $0x24] sm:$0xf]
          %v1259 = vld [vmem:[%s7 + $0x28] sm:$0xf]
          %v1260 = vld [vmem:[%s7 + $0x2c] sm:$0xf]
          %v1261 = vld [vmem:[%s7 + $0x30] sm:$0xf]
          %v1262 = vld [vmem:[%s7 + $0x34] sm:$0xf]
          %v1263 = vld [vmem:[%s7 + $0x38] sm:$0xf]
          %v1264 = vld [vmem:[%s7 + $0x3c] sm:$0xf]
          %v1265 = vld [vmem:[%s14 + $0x1] sm:$0x1]
          %v1266 = vlaneseq
          %v1267 = vshrl.u32 %v1266, 7
          %v1268 = vsub.s32 0, %v1267
          %v1269 = vrot.slane %v1265, %v1268
          %v1286 = vunpack.c.l.b16 %v1249
          %v1287 = vunpack.c.l.b16 %v1250
          %v1288 = vunpack.c.l.b16 %v1251
          %v1289 = vunpack.c.l.b16 %v1252
          %v1290 = vunpack.c.l.b16 %v1253
          %v1291 = vunpack.c.l.b16 %v1254
          %v1292 = vunpack.c.l.b16 %v1255
          %v1293 = vunpack.c.l.b16 %v1256
          %v1294 = vunpack.c.l.b16 %v1257
          %v1295 = vunpack.c.l.b16 %v1258
          %v1296 = vunpack.c.l.b16 %v1259
          %v1297 = vunpack.c.l.b16 %v1260
          %v1298 = vunpack.c.l.b16 %v1261
          %v1299 = vunpack.c.l.b16 %v1262
          %v1300 = vunpack.c.l.b16 %v1263
          %v1301 = vunpack.c.l.b16 %v1264
          %v1302 = vpack.c.b16 %v1287, %v1286
          %v1303 = vpack.c.b16 %v1289, %v1288
          %v1304 = vpack.c.b16 %v1291, %v1290
          %v1305 = vpack.c.b16 %v1293, %v1292
          %v1306 = vpack.c.b16 %v1295, %v1294
          %v1307 = vpack.c.b16 %v1297, %v1296
          %v1308 = vpack.c.b16 %v1299, %v1298
          %v1309 = vpack.c.b16 %v1301, %v1300
          %1318 = vmatprep.subr.bf16.mxu0 0
          %1319 = vmatpush1.bf16.msra.mxu0 %v1309
          %1320 = vmatprep.subr.bf16.mxu0 0
          %1321 = vmatpush1.bf16.msra.mxu0 %v1308
          %1322 = vmatprep.subr.bf16.mxu0 0
          %1323 = vmatpush1.bf16.msra.mxu0 %v1307
          %1324 = vmatprep.subr.bf16.mxu0 0
          %1325 = vmatpush1.bf16.msra.mxu0 %v1306
          %1326 = vmatprep.subr.bf16.mxu0 0
          %1327 = vmatpush1.bf16.msra.mxu0 %v1305
          %1328 = vmatprep.subr.bf16.mxu0 0
          %1329 = vmatpush1.bf16.msra.mxu0 %v1304
          %1330 = vmatprep.subr.bf16.mxu0 0
          %1331 = vmatpush1.bf16.msra.mxu0 %v1303
          %1332 = vmatprep.subr.bf16.mxu0 0
          %1333 = vmatpush1.bf16.msra.mxu0 %v1302
          %1334 = vmatprep.subr.bf16.mxu0 0
          %1335 = vmatpush2.bf16.msra.mxu0 0
          %1336 = vmatprep.subr.bf16.mxu0 0
          %1337 = vmatpush2.bf16.msra.mxu0 0
          %1338 = vmatprep.subr.bf16.mxu0 0
          %1339 = vmatpush2.bf16.msra.mxu0 0
          %1340 = vmatprep.subr.bf16.mxu0 0
          %1341 = vmatpush2.bf16.msra.mxu0 0
          %1342 = vmatprep.subr.bf16.mxu0 0
          %1343 = vmatpush2.bf16.msra.mxu0 0
          %1344 = vmatprep.subr.bf16.mxu0 0
          %1345 = vmatpush2.bf16.msra.mxu0 0
          %1346 = vmatprep.subr.bf16.mxu0 0
          %1347 = vmatpush2.bf16.msra.mxu0 0
          %1348 = vmatprep.subr.bf16.mxu0 0
          %1349 = vmatpush2.bf16.msra.mxu0 0
          %1350 = vmatprep.mubr.bf16.mxu0 0
          %1351 = vmatmul.mubr.bf16.gmra.mxu0 %v1233
          %v1352 = vpop.f32.mrf.mxu0
          %v1353 = vadd.f32 %v1269, %v1352
          %v1354 = vpop.f32.mrf.mxu0
          %v1355 = vpop.f32.mrf.mxu0
          %v1356 = vadd.f32 %v1269, %v1355
          %v1357 = vpop.f32.mrf.mxu0
          %1358 = vmatprep.mubr.bf16.mxu0 0
          %1359 = vmatmul.mubr.bf16.gmra.mxu0 %v1234
          %v1360 = vpop.f32.mrf.mxu0
          %v1361 = vadd.f32 %v1269, %v1360
          %v1362 = vpop.f32.mrf.mxu0
          %v1363 = vpop.f32.mrf.mxu0
          %v1364 = vadd.f32 %v1269, %v1363
          %v1365 = vpop.f32.mrf.mxu0
          %1366 = vmatprep.mubr.bf16.mxu0 0
          %1367 = vmatmul.mubr.bf16.gmra.mxu0 %v1235
          %v1368 = vpop.f32.mrf.mxu0
          %v1369 = vadd.f32 %v1269, %v1368
          %v1370 = vpop.f32.mrf.mxu0
          %v1371 = vpop.f32.mrf.mxu0
          %v1372 = vadd.f32 %v1269, %v1371
          %v1373 = vpop.f32.mrf.mxu0
          %1374 = vmatprep.mubr.bf16.mxu0 0
          %1375 = vmatmul.mubr.bf16.gmra.mxu0 %v1236
          %v1376 = vpop.f32.mrf.mxu0
          %v1377 = vadd.f32 %v1269, %v1376
          %v1378 = vpop.f32.mrf.mxu0
          %v1379 = vpop.f32.mrf.mxu0
          %v1380 = vadd.f32 %v1269, %v1379
          %v1381 = vpop.f32.mrf.mxu0
          %1382 = vmatprep.mubr.bf16.mxu0 0
          %1383 = vmatmul.mubr.bf16.gmra.mxu0 %v1237
          %v1384 = vpop.f32.mrf.mxu0
          %v1385 = vadd.f32 %v1269, %v1384
          %v1386 = vpop.f32.mrf.mxu0
          %v1387 = vpop.f32.mrf.mxu0
          %v1388 = vadd.f32 %v1269, %v1387
          %v1389 = vpop.f32.mrf.mxu0
          %1390 = vmatprep.mubr.bf16.mxu0 0
          %1391 = vmatmul.mubr.bf16.gmra.mxu0 %v1238
          %v1392 = vpop.f32.mrf.mxu0
          %v1393 = vadd.f32 %v1269, %v1392
          %v1394 = vpop.f32.mrf.mxu0
          %v1395 = vpop.f32.mrf.mxu0
          %v1396 = vadd.f32 %v1269, %v1395
          %v1397 = vpop.f32.mrf.mxu0
          %1398 = vmatprep.mubr.bf16.mxu0 0
          %1399 = vmatmul.mubr.bf16.gmra.mxu0 %v1239
          %v1400 = vpop.f32.mrf.mxu0
          %v1401 = vadd.f32 %v1269, %v1400
          %v1402 = vpop.f32.mrf.mxu0
          %v1403 = vpop.f32.mrf.mxu0
          %v1404 = vadd.f32 %v1269, %v1403
          %v1405 = vpop.f32.mrf.mxu0
          %1406 = vmatprep.mubr.bf16.mxu0 0
          %1407 = vmatmul.mubr.bf16.gmra.mxu0 %v1240
          %v1408 = vpop.f32.mrf.mxu0
          %v1409 = vadd.f32 %v1269, %v1408
          %v1410 = vpop.f32.mrf.mxu0
          %v1411 = vpop.f32.mrf.mxu0
          %v1412 = vadd.f32 %v1269, %v1411
          %v1413 = vpop.f32.mrf.mxu0
          %1414 = vmatprep.mubr.bf16.mxu0 0
          %1415 = vmatmul.mubr.bf16.gmra.mxu0 %v1241
          %v1416 = vpop.f32.mrf.mxu0
          %v1417 = vadd.f32 %v1269, %v1416
          %v1418 = vpop.f32.mrf.mxu0
          %v1419 = vpop.f32.mrf.mxu0
          %v1420 = vadd.f32 %v1269, %v1419
          %v1421 = vpop.f32.mrf.mxu0
          %1422 = vmatprep.mubr.bf16.mxu0 0
          %1423 = vmatmul.mubr.bf16.gmra.mxu0 %v1242
          %v1424 = vpop.f32.mrf.mxu0
          %v1425 = vadd.f32 %v1269, %v1424
          %v1426 = vpop.f32.mrf.mxu0
          %v1427 = vpop.f32.mrf.mxu0
          %v1428 = vadd.f32 %v1269, %v1427
          %v1429 = vpop.f32.mrf.mxu0
          %1430 = vmatprep.mubr.bf16.mxu0 0
          %1431 = vmatmul.mubr.bf16.gmra.mxu0 %v1243
          %v1432 = vpop.f32.mrf.mxu0
          %v1433 = vadd.f32 %v1269, %v1432
          %v1434 = vpop.f32.mrf.mxu0
          %v1435 = vpop.f32.mrf.mxu0
          %v1436 = vadd.f32 %v1269, %v1435
          %v1437 = vpop.f32.mrf.mxu0
          %1438 = vmatprep.mubr.bf16.mxu0 0
          %1439 = vmatmul.mubr.bf16.gmra.mxu0 %v1244
          %v1440 = vpop.f32.mrf.mxu0
          %v1441 = vadd.f32 %v1269, %v1440
          %v1442 = vpop.f32.mrf.mxu0
          %v1443 = vpop.f32.mrf.mxu0
          %v1444 = vadd.f32 %v1269, %v1443
          %v1445 = vpop.f32.mrf.mxu0
          %1446 = vmatprep.mubr.bf16.mxu0 0
          %1447 = vmatmul.mubr.bf16.gmra.mxu0 %v1245
          %v1448 = vpop.f32.mrf.mxu0
          %v1449 = vadd.f32 %v1269, %v1448
          %v1450 = vpop.f32.mrf.mxu0
          %v1451 = vpop.f32.mrf.mxu0
          %v1452 = vadd.f32 %v1269, %v1451
          %v1453 = vpop.f32.mrf.mxu0
          %1454 = vmatprep.mubr.bf16.mxu0 0
          %1455 = vmatmul.mubr.bf16.gmra.mxu0 %v1246
          %v1456 = vpop.f32.mrf.mxu0
          %v1457 = vadd.f32 %v1269, %v1456
          %v1458 = vpop.f32.mrf.mxu0
          %v1459 = vpop.f32.mrf.mxu0
          %v1460 = vadd.f32 %v1269, %v1459
          %v1461 = vpop.f32.mrf.mxu0
          %1462 = vmatprep.mubr.bf16.mxu0 0
          %1463 = vmatmul.mubr.bf16.gmra.mxu0 %v1247
          %v1464 = vpop.f32.mrf.mxu0
          %v1465 = vadd.f32 %v1269, %v1464
          %v1466 = vpop.f32.mrf.mxu0
          %v1467 = vpop.f32.mrf.mxu0
          %v1468 = vadd.f32 %v1269, %v1467
          %v1469 = vpop.f32.mrf.mxu0
          %1470 = vmatprep.mubr.bf16.mxu0 0
          %1471 = vmatmul.mubr.bf16.gmra.mxu0 %v1248
          %v1472 = vpop.f32.mrf.mxu0
          %v1473 = vadd.f32 %v1269, %v1472
          %v1474 = vpop.f32.mrf.mxu0
          %v1475 = vpop.f32.mrf.mxu0
          %v1476 = vadd.f32 %v1269, %v1475
          %v1477 = vpop.f32.mrf.mxu0
          %1478 = vdwg.mxu0
          %v1479 = vmax.f32 %v1353, %v1361
          %v1480 = vmax.f32 %v1356, %v1364
          %v1481 = vmax.f32 %v1479, %v1369
          %v1482 = vmax.f32 %v1480, %v1372
          %v1483 = vmax.f32 %v1481, %v1377
          %v1484 = vmax.f32 %v1482, %v1380
          %v1485 = vmax.f32 %v1483, %v1385
          %v1486 = vmax.f32 %v1484, %v1388
          %v1487 = vmax.f32 %v1485, %v1393
          %v1488 = vmax.f32 %v1486, %v1396
          %v1489 = vmax.f32 %v1487, %v1401
          %v1490 = vmax.f32 %v1488, %v1404
          %v1491 = vmax.f32 %v1489, %v1409
          %v1492 = vmax.f32 %v1490, %v1412
          %v1493 = vmax.f32 %v1491, %v1492
          %v1494 = vrot.slane %v1493, 4
          %v1495 = vmax.f32 %v1493, %v1494
          %v1496 = vrot.slane %v1495, 2
          %v1497 = vmax.f32 %v1495, %v1496
          %v1498 = vrot.slane %v1497, 1
          %v1499 = vmax.f32 %v1497, %v1498
          %v1500 = vmax.f32 %v1417, %v1425
          %v1501 = vmax.f32 %v1420, %v1428
          %v1502 = vmax.f32 %v1500, %v1433
          %v1503 = vmax.f32 %v1501, %v1436
          %v1504 = vmax.f32 %v1502, %v1441
          %v1505 = vmax.f32 %v1503, %v1444
          %v1506 = vmax.f32 %v1504, %v1449
          %v1507 = vmax.f32 %v1505, %v1452
          %v1508 = vmax.f32 %v1506, %v1457
          %v1509 = vmax.f32 %v1507, %v1460
          %v1510 = vmax.f32 %v1508, %v1465
          %v1511 = vmax.f32 %v1509, %v1468
          %v1512 = vmax.f32 %v1510, %v1473
          %v1513 = vmax.f32 %v1511, %v1476
          %v1514 = vmax.f32 %v1512, %v1513
          %v1515 = vrot.slane %v1514, 4
          %v1516 = vmax.f32 %v1514, %v1515
          %v1517 = vrot.slane %v1516, 2
          %v1518 = vmax.f32 %v1516, %v1517
          %v1519 = vrot.slane %v1518, 1
          %v1520 = vmax.f32 %v1518, %v1519
          %v1521 = vpack.c.bf16 %v1499, %v1499
          %v1522 = vpack.c.bf16 %v1520, %v1520
          %v1523 = vld [vmem:[%s9] sm:$0xf]
          %v1524 = vld [vmem:[%s9 + $0x4] sm:$0xf]
          %v1525 = vld [vmem:[%s9 + $0x8] sm:$0xf]
          %v1526 = vld [vmem:[%s9 + $0xc] sm:$0xf]
          %v1527 = vld [vmem:[%s9 + $0x10] sm:$0xf]
          %v1528 = vld [vmem:[%s9 + $0x14] sm:$0xf]
          %v1529 = vld [vmem:[%s9 + $0x18] sm:$0xf]
          %v1530 = vld [vmem:[%s9 + $0x1c] sm:$0xf]
          %v1531 = vld [vmem:[%s9 + $0x20] sm:$0xf]
          %v1532 = vld [vmem:[%s9 + $0x24] sm:$0xf]
          %v1533 = vld [vmem:[%s9 + $0x28] sm:$0xf]
          %v1534 = vld [vmem:[%s9 + $0x2c] sm:$0xf]
          %v1535 = vld [vmem:[%s9 + $0x30] sm:$0xf]
          %v1536 = vld [vmem:[%s9 + $0x34] sm:$0xf]
          %v1537 = vld [vmem:[%s9 + $0x38] sm:$0xf]
          %v1538 = vld [vmem:[%s9 + $0x3c] sm:$0xf]
          %v1539 = vld [vmem:[%s3] sm:$0x3]
          %v1540 = vpack.c.bf16 %v1539, %v1539
          %v1541 = vld [vmem:[%s10] sm:$0xf]
          %v1542 = vld [vmem:[%s10 + $0x4] sm:$0xf]
          %v1543 = vld [vmem:[%s10 + $0x8] sm:$0xf]
          %v1544 = vld [vmem:[%s10 + $0xc] sm:$0xf]
          %v1549 = vunpack.c.l.b16 %v1541
          %v1550 = vunpack.c.l.b16 %v1542
          %v1551 = vunpack.c.l.b16 %v1543
          %v1552 = vunpack.c.l.b16 %v1544
          %v1553 = vpack.c.b16 %v1550, %v1549
          %v1554 = vpack.c.b16 %v1552, %v1551
          %vm1557 = vcmask 261120
          %v1559 = vsel %vm1557, %v1540, 0
          %1561 = vmatprep.subr.bf16.mxu0 0
          %1562 = vmatpush1.bf16.msra.mxu0 0
          %1563 = vmatprep.subr.bf16.mxu0 0
          %1564 = vmatpush1.bf16.msra.mxu0 0
          %1565 = vmatprep.subr.bf16.mxu0 0
          %1566 = vmatpush1.bf16.msra.mxu0 0
          %1567 = vmatprep.subr.bf16.mxu0 0
          %1568 = vmatpush1.bf16.msra.mxu0 0
          %1569 = vmatprep.subr.bf16.mxu0 0
          %1570 = vmatpush1.bf16.msra.mxu0 0
          %1571 = vmatprep.subr.bf16.mxu0 0
          %1572 = vmatpush1.bf16.msra.mxu0 0
          %1573 = vmatprep.subr.bf16.mxu0 0
          %1574 = vmatpush1.bf16.msra.mxu0 %v1554
          %1575 = vmatprep.subr.bf16.mxu0 0
          %1576 = vmatpush1.bf16.msra.mxu0 %v1553
          %1577 = vmatprep.subr.bf16.mxu0 0
          %1578 = vmatpush2.bf16.msra.mxu0 0
          %1579 = vmatprep.subr.bf16.mxu0 0
          %1580 = vmatpush2.bf16.msra.mxu0 0
          %1581 = vmatprep.subr.bf16.mxu0 0
          %1582 = vmatpush2.bf16.msra.mxu0 0
          %1583 = vmatprep.subr.bf16.mxu0 0
          %1584 = vmatpush2.bf16.msra.mxu0 0
          %1585 = vmatprep.subr.bf16.mxu0 0
          %1586 = vmatpush2.bf16.msra.mxu0 0
          %1587 = vmatprep.subr.bf16.mxu0 0
          %1588 = vmatpush2.bf16.msra.mxu0 0
          %1589 = vmatprep.subr.bf16.mxu0 0
          %1590 = vmatpush2.bf16.msra.mxu0 0
          %1591 = vmatprep.subr.bf16.mxu0 0
          %1592 = vmatpush2.bf16.msra.mxu0 0
          %1593 = vmatprep.mubr.bf16.mxu0 0
          %1594 = vmatmul.mubr.bf16.gmra.mxu0 %v1559
          %v1595 = vpop.f32.mrf.mxu0
          %v1596 = vadd.f32 0.0, %v1595
          %v1597 = vpop.f32.mrf.mxu0
          %v1598 = vpop.f32.mrf.mxu0
          %v1599 = vpop.f32.mrf.mxu0
          %1600 = vdwg.mxu0
          %v1603 = vunpack.c.l.b16 %v1521
          %v1604 = vunpack.c.l.b16 %v1522
          %vm1605 = vcmask 1041409
          %v1606 = vsel %vm1605, %v1604, %v1603
          %v1607 = vpack.c.b16 %v1606, %v1606
          %v1625 = vunpack.c.l.b16 %v1523
          %v1626 = vunpack.c.l.b16 %v1524
          %v1627 = vunpack.c.l.b16 %v1525
          %v1628 = vunpack.c.l.b16 %v1526
          %v1629 = vunpack.c.l.b16 %v1527
          %v1630 = vunpack.c.l.b16 %v1528
          %v1631 = vunpack.c.l.b16 %v1529
          %v1632 = vunpack.c.l.b16 %v1530
          %v1633 = vunpack.c.l.b16 %v1531
          %v1634 = vunpack.c.l.b16 %v1532
          %v1635 = vunpack.c.l.b16 %v1533
          %v1636 = vunpack.c.l.b16 %v1534
          %v1637 = vunpack.c.l.b16 %v1535
          %v1638 = vunpack.c.l.b16 %v1536
          %v1639 = vunpack.c.l.b16 %v1537
          %v1640 = vunpack.c.l.b16 %v1538
          %v1641 = vpack.c.b16 %v1626, %v1625
          %v1642 = vpack.c.b16 %v1628, %v1627
          %v1643 = vpack.c.b16 %v1630, %v1629
          %v1644 = vpack.c.b16 %v1632, %v1631
          %v1645 = vpack.c.b16 %v1634, %v1633
          %v1646 = vpack.c.b16 %v1636, %v1635
          %v1647 = vpack.c.b16 %v1638, %v1637
          %v1648 = vpack.c.b16 %v1640, %v1639
          %1657 = vmatprep.subr.bf16.mxu0 0
          %1658 = vmatpush1.bf16.msra.mxu0 %v1648
          %1659 = vmatprep.subr.bf16.mxu0 0
          %1660 = vmatpush1.bf16.msra.mxu0 %v1647
          %1661 = vmatprep.subr.bf16.mxu0 0
          %1662 = vmatpush1.bf16.msra.mxu0 %v1646
          %1663 = vmatprep.subr.bf16.mxu0 0
          %1664 = vmatpush1.bf16.msra.mxu0 %v1645
          %1665 = vmatprep.subr.bf16.mxu0 0
          %1666 = vmatpush1.bf16.msra.mxu0 %v1644
          %1667 = vmatprep.subr.bf16.mxu0 0
          %1668 = vmatpush1.bf16.msra.mxu0 %v1643
          %1669 = vmatprep.subr.bf16.mxu0 0
          %1670 = vmatpush1.bf16.msra.mxu0 %v1642
          %1671 = vmatprep.subr.bf16.mxu0 0
          %1672 = vmatpush1.bf16.msra.mxu0 %v1641
          %1673 = vmatprep.subr.bf16.mxu0 0
          %1674 = vmatpush2.bf16.msra.mxu0 0
          %1675 = vmatprep.subr.bf16.mxu0 0
          %1676 = vmatpush2.bf16.msra.mxu0 0
          %1677 = vmatprep.subr.bf16.mxu0 0
          %1678 = vmatpush2.bf16.msra.mxu0 0
          %1679 = vmatprep.subr.bf16.mxu0 0
          %1680 = vmatpush2.bf16.msra.mxu0 0
          %1681 = vmatprep.subr.bf16.mxu0 0
          %1682 = vmatpush2.bf16.msra.mxu0 0
          %1683 = vmatprep.subr.bf16.mxu0 0
          %1684 = vmatpush2.bf16.msra.mxu0 0
          %1685 = vmatprep.subr.bf16.mxu0 0
          %1686 = vmatpush2.bf16.msra.mxu0 0
          %1687 = vmatprep.subr.bf16.mxu0 0
          %1688 = vmatpush2.bf16.msra.mxu0 0
          %1689 = vmatprep.mubr.bf16.mxu0 0
          %1690 = vmatmul.mubr.bf16.gmra.mxu0 %v1607
          %v1691 = vpop.f32.mrf.mxu0
          %v1692 = vadd.f32 %v1596, %v1691
          %v1693 = vpop.f32.mrf.mxu0
          %v1694 = vpop.f32.mrf.mxu0
          %v1695 = vpop.f32.mrf.mxu0
          %1696 = vdwg.mxu0
          %1697 = vst [vmem:[#allocation2] sm:$0x3] %v1692
          %vm1698 = vcmask 0
          %1699 = vst.msk [vmem:[#allocation8] sm:$0x1] %vm1698, 0.0
        $region100: #{diffu_completion_forward.21} parent=87 // pred_fallthru
          _
        %v1700 = vld [vmem:[%s614] sm:$0xff]
        %v1701 = vld [vmem:[%s614 + $0x8] sm:$0xff]
        %v1702 = vld [vmem:[%s614 + $0x10] sm:$0xff]
        %v1703 = vld [vmem:[%s614 + $0x18] sm:$0xff]
        %v1704 = vld [vmem:[%s614 + $0x20] sm:$0xff]
        %v1705 = vld [vmem:[%s614 + $0x28] sm:$0xff]
        %v1706 = vld [vmem:[%s614 + $0x30] sm:$0xff]
        %v1707 = vld [vmem:[%s614 + $0x38] sm:$0xff]
        %v1708 = vld [vmem:[%s614 + $0x40] sm:$0xff]
        %v1709 = vld [vmem:[%s614 + $0x48] sm:$0xff]
        %v1710 = vld [vmem:[%s614 + $0x50] sm:$0xff]
        %v1711 = vld [vmem:[%s614 + $0x58] sm:$0xff]
        %v1712 = vld [vmem:[%s614 + $0x60] sm:$0xff]
        %v1713 = vld [vmem:[%s614 + $0x68] sm:$0xff]
        %v1714 = vld [vmem:[%s614 + $0x70] sm:$0xff]
        %v1715 = vld [vmem:[%s614 + $0x78] sm:$0xff]
        %v1716 = vld [vmem:[%s624] sm:$0xff]
        %v1717 = vld [vmem:[%s624 + $0x8] sm:$0xff]
        %v1718 = vld [vmem:[%s624 + $0x10] sm:$0xff]
        %v1719 = vld [vmem:[%s624 + $0x18] sm:$0xff]
        %v1720 = vld [vmem:[%s624 + $0x20] sm:$0xff]
        %v1721 = vld [vmem:[%s624 + $0x28] sm:$0xff]
        %v1722 = vld [vmem:[%s624 + $0x30] sm:$0xff]
        %v1723 = vld [vmem:[%s624 + $0x38] sm:$0xff]
        %v1724 = vld [vmem:[%s624 + $0x40] sm:$0xff]
        %v1725 = vld [vmem:[%s624 + $0x48] sm:$0xff]
        %v1726 = vld [vmem:[%s624 + $0x50] sm:$0xff]
        %v1727 = vld [vmem:[%s624 + $0x58] sm:$0xff]
        %v1728 = vld [vmem:[%s624 + $0x60] sm:$0xff]
        %v1729 = vld [vmem:[%s624 + $0x68] sm:$0xff]
        %v1730 = vld [vmem:[%s624 + $0x70] sm:$0xff]
        %v1731 = vld [vmem:[%s624 + $0x78] sm:$0xff]
        %s1732 = sld [smem:[#allocation3 + %s35]]
        %v1733 = vstv %s1732
        %v1734 = vmul.f32 %v1733, %v1700
        %v1735 = vmul.f32 %v1733, %v1701
        %v1736 = vmul.f32 %v1733, %v1702
        %v1737 = vmul.f32 %v1733, %v1703
        %v1738 = vmul.f32 %v1733, %v1704
        %v1739 = vmul.f32 %v1733, %v1705
        %v1740 = vmul.f32 %v1733, %v1706
        %v1741 = vmul.f32 %v1733, %v1707
        %v1742 = vmul.f32 %v1733, %v1708
        %v1743 = vmul.f32 %v1733, %v1709
        %v1744 = vmul.f32 %v1733, %v1710
        %v1745 = vmul.f32 %v1733, %v1711
        %v1746 = vmul.f32 %v1733, %v1712
        %v1747 = vmul.f32 %v1733, %v1713
        %v1748 = vmul.f32 %v1733, %v1714
        %v1749 = vmul.f32 %v1733, %v1715
        %s1750 = sld [smem:[#allocation6 + %s35]]
        %v1751 = vstv %s1750
        %v1752 = vmul.f32 %v1751, %v1716
        %v1753 = vmul.f32 %v1751, %v1717
        %v1754 = vmul.f32 %v1751, %v1718
        %v1755 = vmul.f32 %v1751, %v1719
        %v1756 = vmul.f32 %v1751, %v1720
        %v1757 = vmul.f32 %v1751, %v1721
        %v1758 = vmul.f32 %v1751, %v1722
        %v1759 = vmul.f32 %v1751, %v1723
        %v1760 = vmul.f32 %v1751, %v1724
        %v1761 = vmul.f32 %v1751, %v1725
        %v1762 = vmul.f32 %v1751, %v1726
        %v1763 = vmul.f32 %v1751, %v1727
        %v1764 = vmul.f32 %v1751, %v1728
        %v1765 = vmul.f32 %v1751, %v1729
        %v1766 = vmul.f32 %v1751, %v1730
        %v1767 = vmul.f32 %v1751, %v1731
        %v1768 = vadd.f32 %v1734, %v1752
        %v1769 = vadd.f32 %v1735, %v1753
        %v1770 = vadd.f32 %v1736, %v1754
        %v1771 = vadd.f32 %v1737, %v1755
        %v1772 = vadd.f32 %v1738, %v1756
        %v1773 = vadd.f32 %v1739, %v1757
        %v1774 = vadd.f32 %v1740, %v1758
        %v1775 = vadd.f32 %v1741, %v1759
        %v1776 = vadd.f32 %v1742, %v1760
        %v1777 = vadd.f32 %v1743, %v1761
        %v1778 = vadd.f32 %v1744, %v1762
        %v1779 = vadd.f32 %v1745, %v1763
        %v1780 = vadd.f32 %v1746, %v1764
        %v1781 = vadd.f32 %v1747, %v1765
        %v1782 = vadd.f32 %v1748, %v1766
        %v1783 = vadd.f32 %v1749, %v1767
        %s1784 = scalar_lea.vmem [#allocation2], %s35
        %v1785 = vld [vmem:[%s1784] sm:$0x1]
        %v1786 = vpack.c.bf16 %v1769, %v1768
        %v1787 = vpack.c.bf16 %v1771, %v1770
        %v1788 = vpack.c.bf16 %v1773, %v1772
        %v1789 = vpack.c.bf16 %v1775, %v1774
        %v1790 = vpack.c.bf16 %v1777, %v1776
        %v1791 = vpack.c.bf16 %v1779, %v1778
        %v1792 = vpack.c.bf16 %v1781, %v1780
        %v1793 = vpack.c.bf16 %v1783, %v1782
        %v1794 = vld [vmem:[%s8] sm:$0x3]
        %v1795 = vlaneseq
        %v1796 = vshrl.u32 %v1795, 7
        %v1797 = vsub.s32 0, %v1796
        %v1798 = vrot.slane %v1785, %v1797
        %vm1799 = vcmask 23552
        %v1801 = vsel %vm1799, %v1786, 0
        %v1804 = vsel %vm1799, %v1787, 0
        %v1807 = vsel %vm1799, %v1788, 0
        %v1810 = vsel %vm1799, %v1789, 0
        %v1813 = vsel %vm1799, %v1790, 0
        %v1816 = vsel %vm1799, %v1791, 0
        %v1819 = vsel %vm1799, %v1792, 0
        %v1822 = vsel %vm1799, %v1793, 0
        %vm1824 = vcmask 1040384
        %vm1825 = vcmask 1041408
        %v1826 = vsel %vm1824, 4294967295, 65535
        %v1827 = vsel %vm1825, %v1826, 0
        %v1829 = vand.u32 %v1794, %v1827
        %1831 = vmatprep.subr.bf16.mxu0 0
        %1832 = vmatpush1.bf16.msra.mxu0 0
        %1833 = vmatprep.subr.bf16.mxu0 0
        %1834 = vmatpush1.bf16.msra.mxu0 0
        %1835 = vmatprep.subr.bf16.mxu0 0
        %1836 = vmatpush1.bf16.msra.mxu0 0
        %1837 = vmatprep.subr.bf16.mxu0 0
        %1838 = vmatpush1.bf16.msra.mxu0 0
        %1839 = vmatprep.subr.bf16.mxu0 0
        %1840 = vmatpush1.bf16.msra.mxu0 0
        %1841 = vmatprep.subr.bf16.mxu0 0
        %1842 = vmatpush1.bf16.msra.mxu0 0
        %1843 = vmatprep.subr.bf16.mxu0 0
        %1844 = vmatpush1.bf16.msra.mxu0 0
        %1845 = vmatprep.subr.bf16.mxu0 0
        %1846 = vmatpush1.bf16.msra.mxu0 %v1829
        %1847 = vmatprep.subr.bf16.mxu0 0
        %1848 = vmatpush2.bf16.msra.mxu0 0
        %1849 = vmatprep.subr.bf16.mxu0 0
        %1850 = vmatpush2.bf16.msra.mxu0 0
        %1851 = vmatprep.subr.bf16.mxu0 0
        %1852 = vmatpush2.bf16.msra.mxu0 0
        %1853 = vmatprep.subr.bf16.mxu0 0
        %1854 = vmatpush2.bf16.msra.mxu0 0
        %1855 = vmatprep.subr.bf16.mxu0 0
        %1856 = vmatpush2.bf16.msra.mxu0 0
        %1857 = vmatprep.subr.bf16.mxu0 0
        %1858 = vmatpush2.bf16.msra.mxu0 0
        %1859 = vmatprep.subr.bf16.mxu0 0
        %1860 = vmatpush2.bf16.msra.mxu0 0
        %1861 = vmatprep.subr.bf16.mxu0 0
        %1862 = vmatpush2.bf16.msra.mxu0 0
        %1863 = vmatprep.mubr.bf16.mxu0 0
        %1864 = vmatmul.mubr.bf16.gmra.mxu0 %v1801
        %v1865 = vpop.f32.mrf.mxu0
        %v1866 = vadd.f32 %v1798, %v1865
        %v1867 = vpop.f32.mrf.mxu0
        %v1868 = vpop.f32.mrf.mxu0
        %v1869 = vadd.f32 %v1798, %v1868
        %v1870 = vpop.f32.mrf.mxu0
        %1871 = vmatprep.mubr.bf16.mxu0 0
        %1872 = vmatmul.mubr.bf16.gmra.mxu0 %v1804
        %v1873 = vpop.f32.mrf.mxu0
        %v1874 = vadd.f32 %v1798, %v1873
        %v1875 = vpop.f32.mrf.mxu0
        %v1876 = vpop.f32.mrf.mxu0
        %v1877 = vadd.f32 %v1798, %v1876
        %v1878 = vpop.f32.mrf.mxu0
        %1879 = vmatprep.mubr.bf16.mxu0 0
        %1880 = vmatmul.mubr.bf16.gmra.mxu0 %v1807
        %v1881 = vpop.f32.mrf.mxu0
        %v1882 = vadd.f32 %v1798, %v1881
        %v1883 = vpop.f32.mrf.mxu0
        %v1884 = vpop.f32.mrf.mxu0
        %v1885 = vadd.f32 %v1798, %v1884
        %v1886 = vpop.f32.mrf.mxu0
        %1887 = vmatprep.mubr.bf16.mxu0 0
        %1888 = vmatmul.mubr.bf16.gmra.mxu0 %v1810
        %v1889 = vpop.f32.mrf.mxu0
        %v1890 = vadd.f32 %v1798, %v1889
        %v1891 = vpop.f32.mrf.mxu0
        %v1892 = vpop.f32.mrf.mxu0
        %v1893 = vadd.f32 %v1798, %v1892
        %v1894 = vpop.f32.mrf.mxu0
        %1895 = vmatprep.mubr.bf16.mxu0 0
        %1896 = vmatmul.mubr.bf16.gmra.mxu0 %v1813
        %v1897 = vpop.f32.mrf.mxu0
        %v1898 = vadd.f32 %v1798, %v1897
        %v1899 = vpop.f32.mrf.mxu0
        %v1900 = vpop.f32.mrf.mxu0
        %v1901 = vadd.f32 %v1798, %v1900
        %v1902 = vpop.f32.mrf.mxu0
        %1903 = vmatprep.mubr.bf16.mxu0 0
        %1904 = vmatmul.mubr.bf16.gmra.mxu0 %v1816
        %v1905 = vpop.f32.mrf.mxu0
        %v1906 = vadd.f32 %v1798, %v1905
        %v1907 = vpop.f32.mrf.mxu0
        %v1908 = vpop.f32.mrf.mxu0
        %v1909 = vadd.f32 %v1798, %v1908
        %v1910 = vpop.f32.mrf.mxu0
        %1911 = vmatprep.mubr.bf16.mxu0 0
        %1912 = vmatmul.mubr.bf16.gmra.mxu0 %v1819
        %v1913 = vpop.f32.mrf.mxu0
        %v1914 = vadd.f32 %v1798, %v1913
        %v1915 = vpop.f32.mrf.mxu0
        %v1916 = vpop.f32.mrf.mxu0
        %v1917 = vadd.f32 %v1798, %v1916
        %v1918 = vpop.f32.mrf.mxu0
        %1919 = vmatprep.mubr.bf16.mxu0 0
        %1920 = vmatmul.mubr.bf16.gmra.mxu0 %v1822
        %v1921 = vpop.f32.mrf.mxu0
        %v1922 = vadd.f32 %v1798, %v1921
        %v1923 = vpop.f32.mrf.mxu0
        %v1924 = vpop.f32.mrf.mxu0
        %v1925 = vadd.f32 %v1798, %v1924
        %v1926 = vpop.f32.mrf.mxu0
        %1927 = vdwg.mxu0
        %v1928 = vld [vmem:[%s14 + $0x2] sm:$0x1]
        %v1929 = vlaneseq
        %v1930 = vshrl.u32 %v1929, 7
        %v1931 = vsub.s32 0, %v1930
        %v1932 = vrot.slane %v1928, %v1931
        %v1933 = vadd.f32 %v1866, %v1932
        %v1934 = vadd.f32 %v1869, %v1932
        %v1935 = vadd.f32 %v1874, %v1932
        %v1936 = vadd.f32 %v1877, %v1932
        %v1937 = vadd.f32 %v1882, %v1932
        %v1938 = vadd.f32 %v1885, %v1932
        %v1939 = vadd.f32 %v1890, %v1932
        %v1940 = vadd.f32 %v1893, %v1932
        %v1941 = vadd.f32 %v1898, %v1932
        %v1942 = vadd.f32 %v1901, %v1932
        %v1943 = vadd.f32 %v1906, %v1932
        %v1944 = vadd.f32 %v1909, %v1932
        %v1945 = vadd.f32 %v1914, %v1932
        %v1946 = vadd.f32 %v1917, %v1932
        %v1947 = vadd.f32 %v1922, %v1932
        %v1948 = vadd.f32 %v1925, %v1932
        %v1949 = vmax.f32 %v1933, 0.0
        %v1950 = vmax.f32 %v1934, 0.0
        %v1951 = vmax.f32 %v1935, 0.0
        %v1952 = vmax.f32 %v1936, 0.0
        %v1953 = vmax.f32 %v1937, 0.0
        %v1954 = vmax.f32 %v1938, 0.0
        %v1955 = vmax.f32 %v1939, 0.0
        %v1956 = vmax.f32 %v1940, 0.0
        %v1957 = vmax.f32 %v1941, 0.0
        %v1958 = vmax.f32 %v1942, 0.0
        %v1959 = vmax.f32 %v1943, 0.0
        %v1960 = vmax.f32 %v1944, 0.0
        %v1961 = vmax.f32 %v1945, 0.0
        %v1962 = vmax.f32 %v1946, 0.0
        %v1963 = vmax.f32 %v1947, 0.0
        %v1964 = vmax.f32 %v1948, 0.0
        %v1965 = vpack.c.bf16 %v1950, %v1949
        %v1966 = vpack.c.bf16 %v1952, %v1951
        %v1967 = vpack.c.bf16 %v1954, %v1953
        %v1968 = vpack.c.bf16 %v1956, %v1955
        %v1969 = vpack.c.bf16 %v1958, %v1957
        %v1970 = vpack.c.bf16 %v1960, %v1959
        %v1971 = vpack.c.bf16 %v1962, %v1961
        %v1972 = vpack.c.bf16 %v1964, %v1963
        %v1973 = vld [vmem:[%s11] sm:$0xf]
        %v1974 = vld [vmem:[%s11 + $0x4] sm:$0xf]
        %v1975 = vld [vmem:[%s11 + $0x8] sm:$0xf]
        %v1976 = vld [vmem:[%s11 + $0xc] sm:$0xf]
        %v1977 = vld [vmem:[%s11 + $0x10] sm:$0xf]
        %v1978 = vld [vmem:[%s11 + $0x14] sm:$0xf]
        %v1979 = vld [vmem:[%s11 + $0x18] sm:$0xf]
        %v1980 = vld [vmem:[%s11 + $0x1c] sm:$0xf]
        %v1981 = vld [vmem:[%s11 + $0x20] sm:$0xf]
        %v1982 = vld [vmem:[%s11 + $0x24] sm:$0xf]
        %v1983 = vld [vmem:[%s11 + $0x28] sm:$0xf]
        %v1984 = vld [vmem:[%s11 + $0x2c] sm:$0xf]
        %v1985 = vld [vmem:[%s11 + $0x30] sm:$0xf]
        %v1986 = vld [vmem:[%s11 + $0x34] sm:$0xf]
        %v1987 = vld [vmem:[%s11 + $0x38] sm:$0xf]
        %v1988 = vld [vmem:[%s11 + $0x3c] sm:$0xf]
        %v1989 = vld [vmem:[%s14 + $0x3] sm:$0x1]
        %v1990 = vlaneseq
        %v1991 = vshrl.u32 %v1990, 7
        %v1992 = vsub.s32 0, %v1991
        %v1993 = vrot.slane %v1989, %v1992
        %v2010 = vunpack.c.l.b16 %v1973
        %v2011 = vunpack.c.l.b16 %v1974
        %v2012 = vunpack.c.l.b16 %v1975
        %v2013 = vunpack.c.l.b16 %v1976
        %v2014 = vunpack.c.l.b16 %v1977
        %v2015 = vunpack.c.l.b16 %v1978
        %v2016 = vunpack.c.l.b16 %v1979
        %v2017 = vunpack.c.l.b16 %v1980
        %v2018 = vunpack.c.l.b16 %v1981
        %v2019 = vunpack.c.l.b16 %v1982
        %v2020 = vunpack.c.l.b16 %v1983
        %v2021 = vunpack.c.l.b16 %v1984
        %v2022 = vunpack.c.l.b16 %v1985
        %v2023 = vunpack.c.l.b16 %v1986
        %v2024 = vunpack.c.l.b16 %v1987
        %v2025 = vunpack.c.l.b16 %v1988
        %v2026 = vpack.c.b16 %v2011, %v2010
        %v2027 = vpack.c.b16 %v2013, %v2012
        %v2028 = vpack.c.b16 %v2015, %v2014
        %v2029 = vpack.c.b16 %v2017, %v2016
        %v2030 = vpack.c.b16 %v2019, %v2018
        %v2031 = vpack.c.b16 %v2021, %v2020
        %v2032 = vpack.c.b16 %v2023, %v2022
        %v2033 = vpack.c.b16 %v2025, %v2024
        %2042 = vmatprep.subr.bf16.mxu0 0
        %2043 = vmatpush1.bf16.msra.mxu0 %v2033
        %2044 = vmatprep.subr.bf16.mxu0 0
        %2045 = vmatpush1.bf16.msra.mxu0 %v2032
        %2046 = vmatprep.subr.bf16.mxu0 0
        %2047 = vmatpush1.bf16.msra.mxu0 %v2031
        %2048 = vmatprep.subr.bf16.mxu0 0
        %2049 = vmatpush1.bf16.msra.mxu0 %v2030
        %2050 = vmatprep.subr.bf16.mxu0 0
        %2051 = vmatpush1.bf16.msra.mxu0 %v2029
        %2052 = vmatprep.subr.bf16.mxu0 0
        %2053 = vmatpush1.bf16.msra.mxu0 %v2028
        %2054 = vmatprep.subr.bf16.mxu0 0
        %2055 = vmatpush1.bf16.msra.mxu0 %v2027
        %2056 = vmatprep.subr.bf16.mxu0 0
        %2057 = vmatpush1.bf16.msra.mxu0 %v2026
        %2058 = vmatprep.subr.bf16.mxu0 0
        %2059 = vmatpush2.bf16.msra.mxu0 0
        %2060 = vmatprep.subr.bf16.mxu0 0
        %2061 = vmatpush2.bf16.msra.mxu0 0
        %2062 = vmatprep.subr.bf16.mxu0 0
        %2063 = vmatpush2.bf16.msra.mxu0 0
        %2064 = vmatprep.subr.bf16.mxu0 0
        %2065 = vmatpush2.bf16.msra.mxu0 0
        %2066 = vmatprep.subr.bf16.mxu0 0
        %2067 = vmatpush2.bf16.msra.mxu0 0
        %2068 = vmatprep.subr.bf16.mxu0 0
        %2069 = vmatpush2.bf16.msra.mxu0 0
        %2070 = vmatprep.subr.bf16.mxu0 0
        %2071 = vmatpush2.bf16.msra.mxu0 0
        %2072 = vmatprep.subr.bf16.mxu0 0
        %2073 = vmatpush2.bf16.msra.mxu0 0
        %2074 = vmatprep.mubr.bf16.mxu0 0
        %2075 = vmatmul.mubr.bf16.gmra.mxu0 %v1965
        %v2076 = vpop.f32.mrf.mxu0
        %v2077 = vadd.f32 %v1993, %v2076
        %v2078 = vpop.f32.mrf.mxu0
        %v2079 = vpop.f32.mrf.mxu0
        %v2080 = vadd.f32 %v1993, %v2079
        %v2081 = vpop.f32.mrf.mxu0
        %2082 = vmatprep.mubr.bf16.mxu0 0
        %2083 = vmatmul.mubr.bf16.gmra.mxu0 %v1966
        %v2084 = vpop.f32.mrf.mxu0
        %v2085 = vadd.f32 %v1993, %v2084
        %v2086 = vpop.f32.mrf.mxu0
        %v2087 = vpop.f32.mrf.mxu0
        %v2088 = vadd.f32 %v1993, %v2087
        %v2089 = vpop.f32.mrf.mxu0
        %2090 = vmatprep.mubr.bf16.mxu0 0
        %2091 = vmatmul.mubr.bf16.gmra.mxu0 %v1967
        %v2092 = vpop.f32.mrf.mxu0
        %v2093 = vadd.f32 %v1993, %v2092
        %v2094 = vpop.f32.mrf.mxu0
        %v2095 = vpop.f32.mrf.mxu0
        %v2096 = vadd.f32 %v1993, %v2095
        %v2097 = vpop.f32.mrf.mxu0
        %2098 = vmatprep.mubr.bf16.mxu0 0
        %2099 = vmatmul.mubr.bf16.gmra.mxu0 %v1968
        %v2100 = vpop.f32.mrf.mxu0
        %v2101 = vadd.f32 %v1993, %v2100
        %v2102 = vpop.f32.mrf.mxu0
        %v2103 = vpop.f32.mrf.mxu0
        %v2104 = vadd.f32 %v1993, %v2103
        %v2105 = vpop.f32.mrf.mxu0
        %2106 = vmatprep.mubr.bf16.mxu0 0
        %2107 = vmatmul.mubr.bf16.gmra.mxu0 %v1969
        %v2108 = vpop.f32.mrf.mxu0
        %v2109 = vadd.f32 %v1993, %v2108
        %v2110 = vpop.f32.mrf.mxu0
        %v2111 = vpop.f32.mrf.mxu0
        %v2112 = vadd.f32 %v1993, %v2111
        %v2113 = vpop.f32.mrf.mxu0
        %2114 = vmatprep.mubr.bf16.mxu0 0
        %2115 = vmatmul.mubr.bf16.gmra.mxu0 %v1970
        %v2116 = vpop.f32.mrf.mxu0
        %v2117 = vadd.f32 %v1993, %v2116
        %v2118 = vpop.f32.mrf.mxu0
        %v2119 = vpop.f32.mrf.mxu0
        %v2120 = vadd.f32 %v1993, %v2119
        %v2121 = vpop.f32.mrf.mxu0
        %2122 = vmatprep.mubr.bf16.mxu0 0
        %2123 = vmatmul.mubr.bf16.gmra.mxu0 %v1971
        %v2124 = vpop.f32.mrf.mxu0
        %v2125 = vadd.f32 %v1993, %v2124
        %v2126 = vpop.f32.mrf.mxu0
        %v2127 = vpop.f32.mrf.mxu0
        %v2128 = vadd.f32 %v1993, %v2127
        %v2129 = vpop.f32.mrf.mxu0
        %2130 = vmatprep.mubr.bf16.mxu0 0
        %2131 = vmatmul.mubr.bf16.gmra.mxu0 %v1972
        %v2132 = vpop.f32.mrf.mxu0
        %v2133 = vadd.f32 %v1993, %v2132
        %v2134 = vpop.f32.mrf.mxu0
        %v2135 = vpop.f32.mrf.mxu0
        %v2136 = vadd.f32 %v1993, %v2135
        %v2137 = vpop.f32.mrf.mxu0
        %2138 = vdwg.mxu0
        %v2139 = vmax.f32 %v2077, 0.0
        %v2140 = vmax.f32 %v2080, 0.0
        %v2141 = vmax.f32 %v2085, 0.0
        %v2142 = vmax.f32 %v2088, 0.0
        %v2143 = vmax.f32 %v2093, 0.0
        %v2144 = vmax.f32 %v2096, 0.0
        %v2145 = vmax.f32 %v2101, 0.0
        %v2146 = vmax.f32 %v2104, 0.0
        %v2147 = vmax.f32 %v2109, 0.0
        %v2148 = vmax.f32 %v2112, 0.0
        %v2149 = vmax.f32 %v2117, 0.0
        %v2150 = vmax.f32 %v2120, 0.0
        %v2151 = vmax.f32 %v2125, 0.0
        %v2152 = vmax.f32 %v2128, 0.0
        %v2153 = vmax.f32 %v2133, 0.0
        %v2154 = vmax.f32 %v2136, 0.0
        %v2155 = vpack.c.bf16 %v2140, %v2139
        %v2156 = vpack.c.bf16 %v2142, %v2141
        %v2157 = vpack.c.bf16 %v2144, %v2143
        %v2158 = vpack.c.bf16 %v2146, %v2145
        %v2159 = vpack.c.bf16 %v2148, %v2147
        %v2160 = vpack.c.bf16 %v2150, %v2149
        %v2161 = vpack.c.bf16 %v2152, %v2151
        %v2162 = vpack.c.bf16 %v2154, %v2153
        %v2163 = vld [vmem:[%s12] sm:$0xf]
        %v2164 = vld [vmem:[%s12 + $0x4] sm:$0xf]
        %v2165 = vld [vmem:[%s12 + $0x8] sm:$0xf]
        %v2166 = vld [vmem:[%s12 + $0xc] sm:$0xf]
        %v2167 = vld [vmem:[%s12 + $0x10] sm:$0xf]
        %v2168 = vld [vmem:[%s12 + $0x14] sm:$0xf]
        %v2169 = vld [vmem:[%s12 + $0x18] sm:$0xf]
        %v2170 = vld [vmem:[%s12 + $0x1c] sm:$0xf]
        %v2171 = vld [vmem:[%s12 + $0x20] sm:$0xf]
        %v2172 = vld [vmem:[%s12 + $0x24] sm:$0xf]
        %v2173 = vld [vmem:[%s12 + $0x28] sm:$0xf]
        %v2174 = vld [vmem:[%s12 + $0x2c] sm:$0xf]
        %v2175 = vld [vmem:[%s12 + $0x30] sm:$0xf]
        %v2176 = vld [vmem:[%s12 + $0x34] sm:$0xf]
        %v2177 = vld [vmem:[%s12 + $0x38] sm:$0xf]
        %v2178 = vld [vmem:[%s12 + $0x3c] sm:$0xf]
        %v2179 = vld [vmem:[%s13] sm:$0x1]
        %v2181 = vlaneseq
        %v2182 = vshrl.u32 %v2181, 7
        %v2183 = vsub.s32 0, %v2182
        %v2184 = vrot.slane %v2179, %v2183
        %v2202 = vunpack.c.l.b16 %v2163
        %v2203 = vunpack.c.l.b16 %v2164
        %v2204 = vunpack.c.l.b16 %v2165
        %v2205 = vunpack.c.l.b16 %v2166
        %v2206 = vunpack.c.l.b16 %v2167
        %v2207 = vunpack.c.l.b16 %v2168
        %v2208 = vunpack.c.l.b16 %v2169
        %v2209 = vunpack.c.l.b16 %v2170
        %v2210 = vunpack.c.l.b16 %v2171
        %v2211 = vunpack.c.l.b16 %v2172
        %v2212 = vunpack.c.l.b16 %v2173
        %v2213 = vunpack.c.l.b16 %v2174
        %v2214 = vunpack.c.l.b16 %v2175
        %v2215 = vunpack.c.l.b16 %v2176
        %v2216 = vunpack.c.l.b16 %v2177
        %v2217 = vunpack.c.l.b16 %v2178
        %v2218 = vpack.c.b16 %v2203, %v2202
        %v2219 = vpack.c.b16 %v2205, %v2204
        %v2220 = vpack.c.b16 %v2207, %v2206
        %v2221 = vpack.c.b16 %v2209, %v2208
        %v2222 = vpack.c.b16 %v2211, %v2210
        %v2223 = vpack.c.b16 %v2213, %v2212
        %v2224 = vpack.c.b16 %v2215, %v2214
        %v2225 = vpack.c.b16 %v2217, %v2216
        %2234 = vmatprep.subr.bf16.mxu0 0
        %2235 = vmatpush1.bf16.msra.mxu0 %v2225
        %2236 = vmatprep.subr.bf16.mxu0 0
        %2237 = vmatpush1.bf16.msra.mxu0 %v2224
        %2238 = vmatprep.subr.bf16.mxu0 0
        %2239 = vmatpush1.bf16.msra.mxu0 %v2223
        %2240 = vmatprep.subr.bf16.mxu0 0
        %2241 = vmatpush1.bf16.msra.mxu0 %v2222
        %2242 = vmatprep.subr.bf16.mxu0 0
        %2243 = vmatpush1.bf16.msra.mxu0 %v2221
        %2244 = vmatprep.subr.bf16.mxu0 0
        %2245 = vmatpush1.bf16.msra.mxu0 %v2220
        %2246 = vmatprep.subr.bf16.mxu0 0
        %2247 = vmatpush1.bf16.msra.mxu0 %v2219
        %2248 = vmatprep.subr.bf16.mxu0 0
        %2249 = vmatpush1.bf16.msra.mxu0 %v2218
        %2250 = vmatprep.subr.bf16.mxu0 0
        %2251 = vmatpush2.bf16.msra.mxu0 0
        %2252 = vmatprep.subr.bf16.mxu0 0
        %2253 = vmatpush2.bf16.msra.mxu0 0
        %2254 = vmatprep.subr.bf16.mxu0 0
        %2255 = vmatpush2.bf16.msra.mxu0 0
        %2256 = vmatprep.subr.bf16.mxu0 0
        %2257 = vmatpush2.bf16.msra.mxu0 0
        %2258 = vmatprep.subr.bf16.mxu0 0
        %2259 = vmatpush2.bf16.msra.mxu0 0
        %2260 = vmatprep.subr.bf16.mxu0 0
        %2261 = vmatpush2.bf16.msra.mxu0 0
        %2262 = vmatprep.subr.bf16.mxu0 0
        %2263 = vmatpush2.bf16.msra.mxu0 0
        %2264 = vmatprep.subr.bf16.mxu0 0
        %2265 = vmatpush2.bf16.msra.mxu0 0
        %2266 = vmatprep.mubr.bf16.mxu0 0
        %2267 = vmatmul.mubr.bf16.gmra.mxu0 %v2155
        %v2268 = vpop.f32.mrf.mxu0
        %v2269 = vadd.f32 %v2184, %v2268
        %v2270 = vpop.f32.mrf.mxu0
        %v2271 = vpop.f32.mrf.mxu0
        %v2272 = vadd.f32 %v2184, %v2271
        %v2273 = vpop.f32.mrf.mxu0
        %2274 = vmatprep.mubr.bf16.mxu0 0
        %2275 = vmatmul.mubr.bf16.gmra.mxu0 %v2156
        %v2276 = vpop.f32.mrf.mxu0
        %v2277 = vadd.f32 %v2184, %v2276
        %v2278 = vpop.f32.mrf.mxu0
        %v2279 = vpop.f32.mrf.mxu0
        %v2280 = vadd.f32 %v2184, %v2279
        %v2281 = vpop.f32.mrf.mxu0
        %2282 = vmatprep.mubr.bf16.mxu0 0
        %2283 = vmatmul.mubr.bf16.gmra.mxu0 %v2157
        %v2284 = vpop.f32.mrf.mxu0
        %v2285 = vadd.f32 %v2184, %v2284
        %v2286 = vpop.f32.mrf.mxu0
        %v2287 = vpop.f32.mrf.mxu0
        %v2288 = vadd.f32 %v2184, %v2287
        %v2289 = vpop.f32.mrf.mxu0
        %2290 = vmatprep.mubr.bf16.mxu0 0
        %2291 = vmatmul.mubr.bf16.gmra.mxu0 %v2158
        %v2292 = vpop.f32.mrf.mxu0
        %v2293 = vadd.f32 %v2184, %v2292
        %v2294 = vpop.f32.mrf.mxu0
        %v2295 = vpop.f32.mrf.mxu0
        %v2296 = vadd.f32 %v2184, %v2295
        %v2297 = vpop.f32.mrf.mxu0
        %2298 = vmatprep.mubr.bf16.mxu0 0
        %2299 = vmatmul.mubr.bf16.gmra.mxu0 %v2159
        %v2300 = vpop.f32.mrf.mxu0
        %v2301 = vadd.f32 %v2184, %v2300
        %v2302 = vpop.f32.mrf.mxu0
        %v2303 = vpop.f32.mrf.mxu0
        %v2304 = vadd.f32 %v2184, %v2303
        %v2305 = vpop.f32.mrf.mxu0
        %2306 = vmatprep.mubr.bf16.mxu0 0
        %2307 = vmatmul.mubr.bf16.gmra.mxu0 %v2160
        %v2308 = vpop.f32.mrf.mxu0
        %v2309 = vadd.f32 %v2184, %v2308
        %v2310 = vpop.f32.mrf.mxu0
        %v2311 = vpop.f32.mrf.mxu0
        %v2312 = vadd.f32 %v2184, %v2311
        %v2313 = vpop.f32.mrf.mxu0
        %2314 = vmatprep.mubr.bf16.mxu0 0
        %2315 = vmatmul.mubr.bf16.gmra.mxu0 %v2161
        %v2316 = vpop.f32.mrf.mxu0
        %v2317 = vadd.f32 %v2184, %v2316
        %v2318 = vpop.f32.mrf.mxu0
        %v2319 = vpop.f32.mrf.mxu0
        %v2320 = vadd.f32 %v2184, %v2319
        %v2321 = vpop.f32.mrf.mxu0
        %2322 = vmatprep.mubr.bf16.mxu0 0
        %2323 = vmatmul.mubr.bf16.gmra.mxu0 %v2162
        %v2324 = vpop.f32.mrf.mxu0
        %v2325 = vadd.f32 %v2184, %v2324
        %v2326 = vpop.f32.mrf.mxu0
        %v2327 = vpop.f32.mrf.mxu0
        %v2328 = vadd.f32 %v2184, %v2327
        %v2329 = vpop.f32.mrf.mxu0
        %2330 = vdwg.mxu0
        %v2331 = vsub.f32 %v2269, %v1716
        %v2332 = vsub.f32 %v2272, %v1717
        %v2333 = vsub.f32 %v2277, %v1718
        %v2334 = vsub.f32 %v2280, %v1719
        %v2335 = vsub.f32 %v2285, %v1720
        %v2336 = vsub.f32 %v2288, %v1721
        %v2337 = vsub.f32 %v2293, %v1722
        %v2338 = vsub.f32 %v2296, %v1723
        %v2339 = vsub.f32 %v2301, %v1724
        %v2340 = vsub.f32 %v2304, %v1725
        %v2341 = vsub.f32 %v2309, %v1726
        %v2342 = vsub.f32 %v2312, %v1727
        %v2343 = vsub.f32 %v2317, %v1728
        %v2344 = vsub.f32 %v2320, %v1729
        %v2345 = vsub.f32 %v2325, %v1730
        %v2346 = vsub.f32 %v2328, %v1731
        %v2347 = vld [vmem:[#allocation8] sm:$0x1]
        %v2348 = vmul.f32 %v2331, %v2331
        %v2349 = vmul.f32 %v2332, %v2332
        %v2350 = vmul.f32 %v2333, %v2333
        %v2351 = vmul.f32 %v2334, %v2334
        %v2352 = vmul.f32 %v2335, %v2335
        %v2353 = vmul.f32 %v2336, %v2336
        %v2354 = vmul.f32 %v2337, %v2337
        %v2355 = vmul.f32 %v2338, %v2338
        %v2356 = vmul.f32 %v2339, %v2339
        %v2357 = vmul.f32 %v2340, %v2340
        %v2358 = vmul.f32 %v2341, %v2341
        %v2359 = vmul.f32 %v2342, %v2342
        %v2360 = vmul.f32 %v2343, %v2343
        %v2361 = vmul.f32 %v2344, %v2344
        %v2362 = vmul.f32 %v2345, %v2345
        %v2363 = vmul.f32 %v2346, %v2346
        %v2364 = vsel %vm1799, %v2348, 0.0
        %v2365 = vsel %vm1799, %v2349, 0.0
        %v2366 = vadd.f32 %v2364, %v2365
        %v2367 = vsel %vm1799, %v2350, 0.0
        %v2368 = vadd.f32 %v2366, %v2367
        %v2369 = vsel %vm1799, %v2351, 0.0
        %v2370 = vadd.f32 %v2368, %v2369
        %v2371 = vsel %vm1799, %v2352, 0.0
        %v2372 = vadd.f32 %v2370, %v2371
        %v2373 = vsel %vm1799, %v2353, 0.0
        %v2374 = vadd.f32 %v2372, %v2373
        %v2375 = vsel %vm1799, %v2354, 0.0
        %v2376 = vadd.f32 %v2374, %v2375
        %v2377 = vsel %vm1799, %v2355, 0.0
        %v2378 = vadd.f32 %v2376, %v2377
        %v2379 = vsel %vm1799, %v2356, 0.0
        %v2380 = vadd.f32 %v2378, %v2379
        %v2381 = vsel %vm1799, %v2357, 0.0
        %v2382 = vadd.f32 %v2380, %v2381
        %v2383 = vsel %vm1799, %v2358, 0.0
        %v2384 = vadd.f32 %v2382, %v2383
        %v2385 = vsel %vm1799, %v2359, 0.0
        %v2386 = vadd.f32 %v2384, %v2385
        %v2387 = vsel %vm1799, %v2360, 0.0
        %v2388 = vadd.f32 %v2386, %v2387
        %v2389 = vsel %vm1799, %v2361, 0.0
        %v2390 = vadd.f32 %v2388, %v2389
        %v2391 = vsel %vm1799, %v2362, 0.0
        %v2392 = vadd.f32 %v2390, %v2391
        %v2393 = vsel %vm1799, %v2363, 0.0
        %v2394 = vadd.f32 %v2392, %v2393
        %2395 = vadd.xlane.f32.xlu0 %v2394
        %v2396 = vpop.xlane.xlu0 %2395
        %v2397 = vrot.slane %v2396, 4
        %v2398 = vadd.f32 %v2396, %v2397
        %v2399 = vrot.slane %v2398, 2
        %v2400 = vadd.f32 %v2398, %v2399
        %v2401 = vrot.slane %v2400, 1
        %v2402 = vadd.f32 %v2400, %v2401
        %s2403 = vtos %v2402
        %v2404 = vstv %s2403
        %v2405 = vadd.f32 %v2347, %v2404
        %vm2406 = vcmask 0
        %2407 = vst.msk [vmem:[#allocation8] sm:$0x1] %vm2406, %v2405
        // Predicated region
        $region101: #{diffu_completion_forward.21} parent=87 // pred_check
          %p2408 = pneg %p427
        $region102: #{diffu_completion_forward.21} parent=87 // pred_check_branch
          %2410 = sbr.rel (%p2408) target = $region104
        $region103: #{diffu_completion_forward.21} parent=87 // pred_region
          %s2412 = ssub.s32 16, 16
          %2413 = vsyncadd [#allocation4], %s2412
          %s2415 = sshll.u32 [#allocation8], 4
          %s2416 = int_to_ptr.vmem [resolvable:$true] %s2415
          %2418 = dma.vmem_to_hbm [thread:$0]  %s2416, 16, %s17, [#allocation4]
        $region104: #{diffu_completion_forward.21} parent=87 // pred_fallthru
          _
        // Predicated region
        $region105: #{diffu_completion_forward.21} parent=87 // pred_check
          %p2419 = pneg %p427
        $region106: #{diffu_completion_forward.21} parent=87 // pred_check_branch
          %2421 = sbr.rel (%p2419) target = $region108
        $region107: #{diffu_completion_forward.21} parent=87 // pred_region
          %2422 = dma.done [#allocation4], 16
        $region108: #{diffu_completion_forward.21} parent=87 // pred_fallthru
          _
      $region88: #{diffu_completion_forward.21} parent=5 // pred_fallthru
        _
      %p2423 = scmp.le.s32.totalorder 2, %s26
      // Predicated region
      $region109: #{diffu_completion_forward.21} parent=5 // pred_check
        %p2424 = pneg %p2423
      $region110: #{diffu_completion_forward.21} parent=5 // pred_check_branch
        %2426 = sbr.rel (%p2424) target = $region112
      $region111: #{diffu_completion_forward.21} parent=5 // pred_region
        %s2427 = ssub.s32 %s26, 2
      $region112: #{diffu_completion_forward.21} parent=5 // pred_fallthru
        _
    $region6: #{diffu_completion_forward.21} parent=1 // loop_footer
      %s30 = sadd.s32 1, %s26
    $region7: #{diffu_completion_forward.21} parent=1 // loop_footer_branch
      %25 = sbr.rel target = $region3
    $region8: #{diffu_completion_forward.21} parent=1 // loop_exit
      _
    %2428 = vsyncpa [#allocation4], 1
    %s2429 = scalar_lea.sflag [#allocation4], 1
    %2430 = vsyncpa %s2429, 1
    %2431 = vsyncpa [#allocation5], 1
    %s2432 = scalar_lea.sflag [#allocation5], 1
    %2433 = vsyncpa %s2432, 1
    %2434 = vsyncpa [#allocation7], 1

</llo_original>
